<compile_context>
chip_gen: v7x
topology: tpu7x:2x2x1
jax: 0.10.0
libtpu: 0.0.40
codegen_flags: <defaults>
</compile_context>

<pallas_src>
import jax
import jax.numpy as jnp
from jax.experimental import pallas as pl
from jax.experimental.pallas import tpu as pltpu


# ----------------------------- Pallas kernel ------------------------------- #
def level_fusion_kernel(x1_ref, x2_ref, wb1_ref, bb1_ref, wb2_ref, bb2_ref,
                        wf_ref, bf_ref, o_ref):
    """One (batch, spatial-tile) step of the fused LevelFusion forward."""
    ts = o_ref.shape[-1]
    cout = o_ref.shape[1]
    acc = jnp.zeros((cout, ts), jnp.float32)

    row_off = 0  # row offset of the current branch block inside wf's columns
    for x_ref, wb_ref, bb_ref in ((x1_ref, wb1_ref, bb1_ref),
                                  (x2_ref, wb2_ref, bb2_ref)):
        n_blk, blk_out, blk_in = wb_ref.shape
        for b in range(n_blk):
            # grouped branch conv: only the diagonal block is multiplied
            xb = x_ref[0, b * blk_in:(b + 1) * blk_in, :]
            hb = jnp.dot(wb_ref[b], xb, preferred_element_type=jnp.float32)
            # folded BN + ReLU + bf16 cast fused (no big f32 hidden temporary)
            hb = jnp.maximum(
                hb + bb_ref[b * blk_out:(b + 1) * blk_out, :], 0.0
            ).astype(wf_ref.dtype)
            # fusion conv accumulated block-by-block (hidden never materialised)
            acc += jnp.dot(wf_ref[:, row_off:row_off + blk_out], hb,
                           preferred_element_type=jnp.float32)
            row_off += blk_out

    o_ref[0, :, :] = jnp.maximum(acc + bf_ref[...], 0.0).astype(o_ref.dtype)


def level_fusion_pallas(x1, x2, wb1, bb1, wb2, bb2, wf, bf, *,
                        tile_s=512, out_dtype=jnp.bfloat16,
                        vmem_limit_bytes=48 * 1024 * 1024):
    """relu( wf @ concat_i relu(blockdiag(wb_i) @ x_i + bb_i) + bf ).

    x_i : (N, C_i, S)                     bf16 activations, channels-first
    wb_i: (n_blk_i, BLK_out_i, BLK_in_i)  packed diagonal-block branch weights
    bb_i: (C_mid_i, 1)                    folded BN bias (f32)
    wf  : (C_out, C_mid_total)            fusion weight (bf16)
    bf  : (C_out, 1)                      folded BN bias (f32)
    returns (N, C_out, S) in out_dtype.
    """
    N, c1, S = x1.shape
    _, c2, S2 = x2.shape
    assert S2 == S and x2.shape[0] == N
    cout, cmid = wf.shape
    assert cmid == wb1.shape[0] * wb1.shape[1] + wb2.shape[0] * wb2.shape[1]

    # Spatial tile: full S if it fits (any size is legal as a full dim),
    # otherwise the largest multiple of 128 <= tile_s; a ragged last tile is
    # handled by Pallas (out-of-bounds stores are masked, and garbage input
    # lanes only affect their own masked output lanes).
    if S <= tile_s:
        ts = S
    else:
        ts = max(128, (tile_s // 128) * 128)
    grid = (N, pl.cdiv(S, ts))

    flops = 2 * N * S * (wb1.shape[0] * wb1.shape[1] * wb1.shape[2]
                         + wb2.shape[0] * wb2.shape[1] * wb2.shape[2]
                         + cmid * cout)
    bytes_accessed = (x1.size * x1.dtype.itemsize
                      + x2.size * x2.dtype.itemsize
                      + wb1.size * wb1.dtype.itemsize
                      + wb2.size * wb2.dtype.itemsize
                      + wf.size * wf.dtype.itemsize
                      + (bb1.size + bb2.size + bf.size) * 4
                      + N * cout * S * jnp.dtype(out_dtype).itemsize)
    cost = pl.CostEstimate(flops=int(flops), transcendentals=0,
                           bytes_accessed=int(bytes_accessed))

    def build_and_run(single_buffer_weights):
        def const_spec(arr):
            idx = lambda n, s, _nd=arr.ndim: (0,) * _nd
            if single_buffer_weights:
                # constant operands: index never changes -> one buffer is enough
                return pl.BlockSpec(arr.shape, idx,
                                    pipeline_mode=pl.Buffered(1))
            return pl.BlockSpec(arr.shape, idx)

        grid_spec = pltpu.PrefetchScalarGridSpec(
            num_scalar_prefetch=0,
            grid=grid,
            in_specs=[
                pl.BlockSpec((1, c1, ts), lambda n, s: (n, 0, s)),
                pl.BlockSpec((1, c2, ts), lambda n, s: (n, 0, s)),
                const_spec(wb1), const_spec(bb1),
                const_spec(wb2), const_spec(bb2),
                const_spec(wf), const_spec(bf),
            ],
            out_specs=pl.BlockSpec((1, cout, ts), lambda n, s: (n, 0, s)),
        )
        return pl.pallas_call(
            level_fusion_kernel,
            out_shape=jax.ShapeDtypeStruct((N, cout, S), out_dtype),
            grid_spec=grid_spec,
            compiler_params=pltpu.CompilerParams(
                dimension_semantics=("parallel", "parallel"),
                vmem_limit_bytes=vmem_limit_bytes,
            ),
            cost_estimate=cost,
        )(x1, x2, wb1, bb1, wb2, bb2, wf, bf)

    try:
        return build_and_run(True)
    except Exception:
        # pl.Buffered(1) not supported in this JAX build -> default buffering
        return build_and_run(False)


# --------------------------- parameter plumbing ----------------------------- #
def choose_groups_per_block(groups, cin_pg, cout_pg, target_blk=128):
    """How many groups to pack per diagonal block (~128-wide MXU tiles)."""
    p = max(1, target_blk // max(cin_pg, cout_pg))
    p = min(p, groups)
    while groups % p != 0:
        p -= 1
    return p


def pack_grouped_weight(w, groups, groups_per_block):
    """PyTorch grouped pointwise conv weight (C_out, C_in/G) ->
    diagonal blocks (n_blk, P*cout_pg, P*cin_pg)."""
    cout, cin_pg = w.shape
    cout_pg = cout // groups
    p = groups_per_block
    n_blk = groups // p
    blocks = jnp.zeros((n_blk, p * cout_pg, p * cin_pg), w.dtype)
    for b in range(n_blk):
        for j in range(p):
            g = b * p + j
            blocks = blocks.at[b, j * cout_pg:(j + 1) * cout_pg,
                               j * cin_pg:(j + 1) * cin_pg].set(
                                   w[g * cout_pg:(g + 1) * cout_pg, :])
    return blocks


def grouped_to_dense(w, groups):
    """(C_out, C_in/G) grouped weight -> dense block-diagonal (C_out, C_in)."""
    cout, cin_pg = w.shape
    cout_pg = cout // groups
    dense = jnp.zeros((cout, cin_pg * groups), w.dtype)
    for g in range(groups):
        dense = dense.at[g * cout_pg:(g + 1) * cout_pg,
                         g * cin_pg:(g + 1) * cin_pg].set(
                             w[g * cout_pg:(g + 1) * cout_pg, :])
    return dense


def fold_bn(w, gamma, beta, mean, var, eps):
    """Fold eval-mode BatchNorm over the output-channel rows of a conv weight.
    Returns (w_eff (C_out, ...), b_eff (C_out, 1))."""
    scale = gamma / jnp.sqrt(var + eps)
    return w * scale[:, None], (beta - mean * scale)[:, None]


# ---------------------------------- main ------------------------------------ #
if __name__ == "__main__":
    key = jax.random.PRNGKey(0)

    # Small shapes consistent with the module
    # (production: in=[1024,1024], mid=[1024,1024], out=2048, groups=32).
    N, D, H, W = 2, 4, 8, 8
    in_channels = [32, 32]
    mid_channels = [32, 32]
    out_channels = 64
    groups = 4
    eps_branch = 1e-3   # Temporal_Downsampling's BatchNorm3d(eps=0.001)
    eps_fusion = 1e-5   # fusion nn.BatchNorm3d default eps
    # TODO(synk): ds_scales != (1,1,1) (temporal max-pool before the branch
    # conv) and training-mode BatchNorm statistics are not implemented.

    keys = jax.random.split(key, 8)
    kit = iter(keys)

    xs = [jax.random.normal(next(kit), (N, c, D, H, W), jnp.float32)
          for c in in_channels]

    def make_branch(cin, cmid):
        kw, kg, kb, km, kv = jax.random.split(next(kit), 5)
        w = jax.random.normal(kw, (cmid, cin // groups), jnp.float32) * 0.1
        gamma = 1.0 + 0.1 * jax.random.normal(kg, (cmid,), jnp.float32)
        beta = 0.1 * jax.random.normal(kb, (cmid,), jnp.float32)
        rmean = 0.1 * jax.random.normal(km, (cmid,), jnp.float32)
        rvar = jnp.abs(jax.random.normal(kv, (cmid,), jnp.float32)) + 0.5
        w_eff, b_eff = fold_bn(w, gamma, beta, rmean, rvar, eps_branch)
        p = choose_groups_per_block(groups, cin // groups, cmid // groups)
        return (pack_grouped_weight(w_eff, groups, p), b_eff,
                grouped_to_dense(w_eff, groups))

    wb1, bb1, wd1 = make_branch(in_channels[0], mid_channels[0])
    wb2, bb2, wd2 = make_branch(in_channels[1], mid_channels[1])

    # fusion 1x1x1 conv (C_out, sum(mid)) + BN
    cmid_total = sum(mid_channels)
    kw, kg, kb, km, kv = jax.random.split(next(kit), 5)
    wfuse = jax.random.normal(kw, (out_channels, cmid_total), jnp.float32) * 0.1
    gamma_f = 1.0 + 0.1 * jax.random.normal(kg, (out_channels,), jnp.float32)
    beta_f = 0.1 * jax.random.normal(kb, (out_channels,), jnp.float32)
    rmean_f = 0.1 * jax.random.normal(km, (out_channels,), jnp.float32)
    rvar_f = jnp.abs(jax.random.normal(kv, (out_channels,), jnp.float32)) + 0.5
    wf, bf = fold_bn(wfuse, gamma_f, beta_f, rmean_f, rvar_f, eps_fusion)

    # NCDHW -> (N, C, S): free reshape, no transpose (channels on sublanes,
    # spatial positions on lanes inside the kernel).
    S = D * H * W
    x1 = xs[0].reshape(N, in_channels[0], S)
    x2 = xs[1].reshape(N, in_channels[1], S)

    # bf16 matmul operands, f32 biases / accumulation.
    x1_bf = x1.astype(jnp.bfloat16)
    x2_bf = x2.astype(jnp.bfloat16)
    wb1_bf = wb1.astype(jnp.bfloat16)
    wb2_bf = wb2.astype(jnp.bfloat16)
    wf_bf = wf.astype(jnp.bfloat16)

    out = level_fusion_pallas(x1_bf, x2_bf, wb1_bf, bb1, wb2_bf, bb2,
                              wf_bf, bf, tile_s=512, out_dtype=jnp.bfloat16)
    out = jax.block_until_ready(out)
    out_ncdhw = out.reshape(N, out_channels, D, H, W)   # native NCDHW output
    assert out_ncdhw.shape == (N, out_channels, D, H, W)

    # f32 reference on the same bf16-quantized matmul operands.  Note: like the
    # kernel, it keeps the hidden activation in bf16 before the fusion matmul.
    def reference(x1q, x2q, wd1q, bb1, wd2q, bb2, wfq, bf):
        def branch(xq, wdq, bb):
            h = jnp.einsum('oc,ncs->nos', wdq, xq, precision='highest')
            return jnp.maximum(h + bb[None], 0.0).astype(jnp.bfloat16)
        h = jnp.concatenate([branch(x1q, wd1q, bb1), branch(x2q, wd2q, bb2)],
                            axis=1).astype(jnp.float32)
        y = jnp.einsum('oc,ncs->nos', wfq, h, precision='highest')
        return jnp.maximum(y + bf[None], 0.0)

    ref = reference(x1_bf.astype(jnp.float32), x2_bf.astype(jnp.float32),
                    wd1.astype(jnp.bfloat16).astype(jnp.float32), bb1,
                    wd2.astype(jnp.bfloat16).astype(jnp.float32), bb2,
                    wf.astype(jnp.bfloat16).astype(jnp.float32), bf)

    out_f32 = out.astype(jnp.float32)
    err = float(jnp.max(jnp.abs(out_f32 - ref)))
    assert jnp.allclose(out_f32, ref, atol=3e-2, rtol=3e-2), err
    print("KERNEL_OK")
</pallas_src>

<mosaic_0001>
module attributes {stable_mosaic.version = 11 : i64} {
  func.func @level_fusion_kernel(%arg0: i32, %arg1: i32, %arg2: memref<1x32x256xbf16, #tpu.memory_space<vmem>>, %arg3: memref<1x32x256xbf16, #tpu.memory_space<vmem>>, %arg4: memref<1x32x32xbf16, #tpu.memory_space<vmem>>, %arg5: memref<32x1xf32, #tpu.memory_space<vmem>>, %arg6: memref<1x32x32xbf16, #tpu.memory_space<vmem>>, %arg7: memref<32x1xf32, #tpu.memory_space<vmem>>, %arg8: memref<64x64xbf16, #tpu.memory_space<vmem>>, %arg9: memref<64x1xf32, #tpu.memory_space<vmem>>, %arg10: memref<1x64x256xbf16, #tpu.memory_space<vmem>>) attributes {dimension_semantics = [#tpu.dimension_semantics<parallel>, #tpu.dimension_semantics<parallel>], iteration_bounds = array<i64: 2, 1>, scalar_prefetch = 0 : i64, scratch_operands = 0 : i64, tpu.core_type = #tpu.core_type<tc>, window_params = [{transform_indices = @transform_0, window_bounds = array<i64: 1, 32, 256>}, {transform_indices = @transform_1, window_bounds = array<i64: 1, 32, 256>}, {pipeline_mode = #tpu.pipeline_mode<synchronous>, transform_indices = @transform_2, window_bounds = array<i64: 1, 32, 32>}, {pipeline_mode = #tpu.pipeline_mode<synchronous>, transform_indices = @transform_3, window_bounds = array<i64: 32, 1>}, {pipeline_mode = #tpu.pipeline_mode<synchronous>, transform_indices = @transform_4, window_bounds = array<i64: 1, 32, 32>}, {pipeline_mode = #tpu.pipeline_mode<synchronous>, transform_indices = @transform_5, window_bounds = array<i64: 32, 1>}, {pipeline_mode = #tpu.pipeline_mode<synchronous>, transform_indices = @transform_6, window_bounds = array<i64: 64, 64>}, {pipeline_mode = #tpu.pipeline_mode<synchronous>, transform_indices = @transform_7, window_bounds = array<i64: 64, 1>}, {transform_indices = @transform_8, window_bounds = array<i64: 1, 64, 256>}]} {
    %cst = arith.constant 0.000000e+00 : f32
    %0 = vector.broadcast %cst : f32 to vector<64x256xf32>
    %c0 = arith.constant 0 : index
    %c0_0 = arith.constant 0 : index
    %c0_1 = arith.constant 0 : index
    %1 = vector.load %arg2[%c0, %c0_0, %c0_1] : memref<1x32x256xbf16, #tpu.memory_space<vmem>>, vector<1x32x256xbf16>
    %2 = vector.shape_cast %1 : vector<1x32x256xbf16> to vector<32x256xbf16>
    %c0_2 = arith.constant 0 : index
    %c0_3 = arith.constant 0 : index
    %c0_4 = arith.constant 0 : index
    %3 = vector.load %arg4[%c0_2, %c0_3, %c0_4] : memref<1x32x32xbf16, #tpu.memory_space<vmem>>, vector<1x32x32xbf16>
    %4 = vector.shape_cast %3 : vector<1x32x32xbf16> to vector<32x32xbf16>
    %cst_5 = arith.constant dense<0.000000e+00> : vector<32x256xf32>
    %5 = tpu.matmul %4, %2, %cst_5 {dimension_numbers = #tpu.dot_dimension_numbers<[1], [0], [0], [1], [0, 0, 1, 1], [], []>} : vector<32x32xbf16>, vector<32x256xbf16>, vector<32x256xf32> -> vector<32x256xf32>
    %c0_6 = arith.constant 0 : index
    %c0_7 = arith.constant 0 : index
    %6 = vector.load %arg5[%c0_6, %c0_7] : memref<32x1xf32, #tpu.memory_space<vmem>>, vector<32x1xf32>
    %7 = vector.broadcast %6 : vector<32x1xf32> to vector<32x256xf32>
    %8 = arith.addf %5, %7 : vector<32x256xf32>
    %cst_8 = arith.constant 0.000000e+00 : f32
    %9 = vector.broadcast %cst_8 : f32 to vector<32x256xf32>
    %10 = arith.maximumf %8, %9 : vector<32x256xf32>
    %11 = arith.truncf %10 : vector<32x256xf32> to vector<32x256xbf16>
    %c0_9 = arith.constant 0 : index
    %c0_10 = arith.constant 0 : index
    %12 = vector.load %arg8[%c0_9, %c0_10] : memref<64x64xbf16, #tpu.memory_space<vmem>>, vector<64x32xbf16>
    %cst_11 = arith.constant dense<0.000000e+00> : vector<64x256xf32>
    %13 = tpu.matmul %12, %11, %cst_11 {dimension_numbers = #tpu.dot_dimension_numbers<[1], [0], [0], [1], [0, 0, 1, 1], [], []>} : vector<64x32xbf16>, vector<32x256xbf16>, vector<64x256xf32> -> vector<64x256xf32>
    %14 = arith.addf %0, %13 : vector<64x256xf32>
    %c0_12 = arith.constant 0 : index
    %c0_13 = arith.constant 0 : index
    %c0_14 = arith.constant 0 : index
    %15 = vector.load %arg3[%c0_12, %c0_13, %c0_14] : memref<1x32x256xbf16, #tpu.memory_space<vmem>>, vector<1x32x256xbf16>
    %16 = vector.shape_cast %15 : vector<1x32x256xbf16> to vector<32x256xbf16>
    %c0_15 = arith.constant 0 : index
    %c0_16 = arith.constant 0 : index
    %c0_17 = arith.constant 0 : index
    %17 = vector.load %arg6[%c0_15, %c0_16, %c0_17] : memref<1x32x32xbf16, #tpu.memory_space<vmem>>, vector<1x32x32xbf16>
    %18 = vector.shape_cast %17 : vector<1x32x32xbf16> to vector<32x32xbf16>
    %cst_18 = arith.constant dense<0.000000e+00> : vector<32x256xf32>
    %19 = tpu.matmul %18, %16, %cst_18 {dimension_numbers = #tpu.dot_dimension_numbers<[1], [0], [0], [1], [0, 0, 1, 1], [], []>} : vector<32x32xbf16>, vector<32x256xbf16>, vector<32x256xf32> -> vector<32x256xf32>
    %c0_19 = arith.constant 0 : index
    %c0_20 = arith.constant 0 : index
    %20 = vector.load %arg7[%c0_19, %c0_20] : memref<32x1xf32, #tpu.memory_space<vmem>>, vector<32x1xf32>
    %21 = vector.broadcast %20 : vector<32x1xf32> to vector<32x256xf32>
    %22 = arith.addf %19, %21 : vector<32x256xf32>
    %cst_21 = arith.constant 0.000000e+00 : f32
    %23 = vector.broadcast %cst_21 : f32 to vector<32x256xf32>
    %24 = arith.maximumf %22, %23 : vector<32x256xf32>
    %25 = arith.truncf %24 : vector<32x256xf32> to vector<32x256xbf16>
    %c0_22 = arith.constant 0 : index
    %c32 = arith.constant 32 : index
    %26 = vector.load %arg8[%c0_22, %c32] : memref<64x64xbf16, #tpu.memory_space<vmem>>, vector<64x32xbf16>
    %cst_23 = arith.constant dense<0.000000e+00> : vector<64x256xf32>
    %27 = tpu.matmul %26, %25, %cst_23 {dimension_numbers = #tpu.dot_dimension_numbers<[1], [0], [0], [1], [0, 0, 1, 1], [], []>} : vector<64x32xbf16>, vector<32x256xbf16>, vector<64x256xf32> -> vector<64x256xf32>
    %28 = arith.addf %14, %27 : vector<64x256xf32>
    %c0_24 = arith.constant 0 : index
    %c0_25 = arith.constant 0 : index
    %29 = vector.load %arg9[%c0_24, %c0_25] : memref<64x1xf32, #tpu.memory_space<vmem>>, vector<64x1xf32>
    %30 = vector.broadcast %29 : vector<64x1xf32> to vector<64x256xf32>
    %31 = arith.addf %28, %30 : vector<64x256xf32>
    %cst_26 = arith.constant 0.000000e+00 : f32
    %32 = vector.broadcast %cst_26 : f32 to vector<64x256xf32>
    %33 = arith.maximumf %31, %32 : vector<64x256xf32>
    %34 = arith.truncf %33 : vector<64x256xf32> to vector<64x256xbf16>
    %c0_27 = arith.constant 0 : index
    %c0_28 = arith.constant 0 : index
    %c0_29 = arith.constant 0 : index
    %35 = vector.load %arg10[%c0_27, %c0_28, %c0_29] : memref<1x64x256xbf16, #tpu.memory_space<vmem>>, vector<1x64x256xbf16>
    %36 = vector.shape_cast %35 : vector<1x64x256xbf16> to vector<64x256xbf16>
    %37 = vector.shape_cast %34 : vector<64x256xbf16> to vector<1x64x256xbf16>
    tpu.vector_store %arg10[%c0_27, %c0_28, %c0_29], %37 {strides = array<i32>} : memref<1x64x256xbf16, #tpu.memory_space<vmem>>, vector<1x64x256xbf16>,
    return
  }
  func.func @transform_0(%arg0: i32, %arg1: i32) -> (i32, i32, i32) {
    %c0_i32 = arith.constant 0 : i32
    %c0_i32_0 = arith.constant 0 : i32
    return %arg0, %c0_i32, %arg1 : i32, i32, i32
  }
  func.func @transform_1(%arg0: i32, %arg1: i32) -> (i32, i32, i32) {
    %c0_i32 = arith.constant 0 : i32
    %c0_i32_0 = arith.constant 0 : i32
    return %arg0, %c0_i32, %arg1 : i32, i32, i32
  }
  func.func @transform_2(%arg0: i32, %arg1: i32) -> (i32, i32, i32) {
    %c0_i32 = arith.constant 0 : i32
    %c0_i32_0 = arith.constant 0 : i32
    %c0_i32_1 = arith.constant 0 : i32
    %c0_i32_2 = arith.constant 0 : i32
    return %c0_i32, %c0_i32_0, %c0_i32_1 : i32, i32, i32
  }
  func.func @transform_3(%arg0: i32, %arg1: i32) -> (i32, i32) {
    %c0_i32 = arith.constant 0 : i32
    %c0_i32_0 = arith.constant 0 : i32
    %c0_i32_1 = arith.constant 0 : i32
    return %c0_i32, %c0_i32_0 : i32, i32
  }
  func.func @transform_4(%arg0: i32, %arg1: i32) -> (i32, i32, i32) {
    %c0_i32 = arith.constant 0 : i32
    %c0_i32_0 = arith.constant 0 : i32
    %c0_i32_1 = arith.constant 0 : i32
    %c0_i32_2 = arith.constant 0 : i32
    return %c0_i32, %c0_i32_0, %c0_i32_1 : i32, i32, i32
  }
  func.func @transform_5(%arg0: i32, %arg1: i32) -> (i32, i32) {
    %c0_i32 = arith.constant 0 : i32
    %c0_i32_0 = arith.constant 0 : i32
    %c0_i32_1 = arith.constant 0 : i32
    return %c0_i32, %c0_i32_0 : i32, i32
  }
  func.func @transform_6(%arg0: i32, %arg1: i32) -> (i32, i32) {
    %c0_i32 = arith.constant 0 : i32
    %c0_i32_0 = arith.constant 0 : i32
    %c0_i32_1 = arith.constant 0 : i32
    return %c0_i32, %c0_i32_0 : i32, i32
  }
  func.func @transform_7(%arg0: i32, %arg1: i32) -> (i32, i32) {
    %c0_i32 = arith.constant 0 : i32
    %c0_i32_0 = arith.constant 0 : i32
    %c0_i32_1 = arith.constant 0 : i32
    return %c0_i32, %c0_i32_0 : i32, i32
  }
  func.func @transform_8(%arg0: i32, %arg1: i32) -> (i32, i32, i32) {
    %c0_i32 = arith.constant 0 : i32
    %c0_i32_0 = arith.constant 0 : i32
    return %arg0, %c0_i32, %arg1 : i32, i32, i32
  }
}

module attributes {stable_mosaic.version = 11 : i64} {
  func.func @level_fusion_kernel(%arg0: i32, %arg1: i32, %arg2: memref<1x32x256xbf16, #tpu.memory_space<vmem>>, %arg3: memref<1x32x256xbf16, #tpu.memory_space<vmem>>, %arg4: memref<1x32x32xbf16, #tpu.memory_space<vmem>>, %arg5: memref<32x1xf32, #tpu.memory_space<vmem>>, %arg6: memref<1x32x32xbf16, #tpu.memory_space<vmem>>, %arg7: memref<32x1xf32, #tpu.memory_space<vmem>>, %arg8: memref<64x64xbf16, #tpu.memory_space<vmem>>, %arg9: memref<64x1xf32, #tpu.memory_space<vmem>>, %arg10: memref<1x64x256xbf16, #tpu.memory_space<vmem>>) attributes {dimension_semantics = [#tpu.dimension_semantics<parallel>, #tpu.dimension_semantics<parallel>], iteration_bounds = array<i64: 2, 1>, scalar_prefetch = 0 : i64, scratch_operands = 0 : i64, tpu.core_type = #tpu.core_type<tc>, window_params = [{transform_indices = @transform_0, window_bounds = array<i64: 1, 32, 256>}, {transform_indices = @transform_1, window_bounds = array<i64: 1, 32, 256>}, {pipeline_mode = #tpu.pipeline_mode<synchronous>, transform_indices = @transform_2, window_bounds = array<i64: 1, 32, 32>}, {pipeline_mode = #tpu.pipeline_mode<synchronous>, transform_indices = @transform_3, window_bounds = array<i64: 32, 1>}, {pipeline_mode = #tpu.pipeline_mode<synchronous>, transform_indices = @transform_4, window_bounds = array<i64: 1, 32, 32>}, {pipeline_mode = #tpu.pipeline_mode<synchronous>, transform_indices = @transform_5, window_bounds = array<i64: 32, 1>}, {pipeline_mode = #tpu.pipeline_mode<synchronous>, transform_indices = @transform_6, window_bounds = array<i64: 64, 64>}, {pipeline_mode = #tpu.pipeline_mode<synchronous>, transform_indices = @transform_7, window_bounds = array<i64: 64, 1>}, {transform_indices = @transform_8, window_bounds = array<i64: 1, 64, 256>}]} {
    %cst = arith.constant 0.000000e+00 : f32
    %0 = vector.broadcast %cst : f32 to vector<64x256xf32>
    %c0 = arith.constant 0 : index
    %c0_0 = arith.constant 0 : index
    %c0_1 = arith.constant 0 : index
    %1 = vector.load %arg2[%c0, %c0_0, %c0_1] : memref<1x32x256xbf16, #tpu.memory_space<vmem>>, vector<1x32x256xbf16>
    %2 = vector.shape_cast %1 : vector<1x32x256xbf16> to vector<32x256xbf16>
    %c0_2 = arith.constant 0 : index
    %c0_3 = arith.constant 0 : index
    %c0_4 = arith.constant 0 : index
    %3 = vector.load %arg4[%c0_2, %c0_3, %c0_4] : memref<1x32x32xbf16, #tpu.memory_space<vmem>>, vector<1x32x32xbf16>
    %4 = vector.shape_cast %3 : vector<1x32x32xbf16> to vector<32x32xbf16>
    %cst_5 = arith.constant dense<0.000000e+00> : vector<32x256xf32>
    %5 = tpu.matmul %4, %2, %cst_5 {dimension_numbers = #tpu.dot_dimension_numbers<[1], [0], [0], [1], [0, 0, 1, 1], [], []>} : vector<32x32xbf16>, vector<32x256xbf16>, vector<32x256xf32> -> vector<32x256xf32>
    %c0_6 = arith.constant 0 : index
    %c0_7 = arith.constant 0 : index
    %6 = vector.load %arg5[%c0_6, %c0_7] : memref<32x1xf32, #tpu.memory_space<vmem>>, vector<32x1xf32>
    %7 = vector.broadcast %6 : vector<32x1xf32> to vector<32x256xf32>
    %8 = arith.addf %5, %7 : vector<32x256xf32>
    %cst_8 = arith.constant 0.000000e+00 : f32
    %9 = vector.broadcast %cst_8 : f32 to vector<32x256xf32>
    %10 = arith.maximumf %8, %9 : vector<32x256xf32>
    %11 = arith.truncf %10 : vector<32x256xf32> to vector<32x256xbf16>
    %c0_9 = arith.constant 0 : index
    %c0_10 = arith.constant 0 : index
    %12 = vector.load %arg8[%c0_9, %c0_10] : memref<64x64xbf16, #tpu.memory_space<vmem>>, vector<64x32xbf16>
    %cst_11 = arith.constant dense<0.000000e+00> : vector<64x256xf32>
    %13 = tpu.matmul %12, %11, %cst_11 {dimension_numbers = #tpu.dot_dimension_numbers<[1], [0], [0], [1], [0, 0, 1, 1], [], []>} : vector<64x32xbf16>, vector<32x256xbf16>, vector<64x256xf32> -> vector<64x256xf32>
    %14 = arith.addf %0, %13 : vector<64x256xf32>
    %c0_12 = arith.constant 0 : index
    %c0_13 = arith.constant 0 : index
    %c0_14 = arith.constant 0 : index
    %15 = vector.load %arg3[%c0_12, %c0_13, %c0_14] : memref<1x32x256xbf16, #tpu.memory_space<vmem>>, vector<1x32x256xbf16>
    %16 = vector.shape_cast %15 : vector<1x32x256xbf16> to vector<32x256xbf16>
    %c0_15 = arith.constant 0 : index
    %c0_16 = arith.constant 0 : index
    %c0_17 = arith.constant 0 : index
    %17 = vector.load %arg6[%c0_15, %c0_16, %c0_17] : memref<1x32x32xbf16, #tpu.memory_space<vmem>>, vector<1x32x32xbf16>
    %18 = vector.shape_cast %17 : vector<1x32x32xbf16> to vector<32x32xbf16>
    %cst_18 = arith.constant dense<0.000000e+00> : vector<32x256xf32>
    %19 = tpu.matmul %18, %16, %cst_18 {dimension_numbers = #tpu.dot_dimension_numbers<[1], [0], [0], [1], [0, 0, 1, 1], [], []>} : vector<32x32xbf16>, vector<32x256xbf16>, vector<32x256xf32> -> vector<32x256xf32>
    %c0_19 = arith.constant 0 : index
    %c0_20 = arith.constant 0 : index
    %20 = vector.load %arg7[%c0_19, %c0_20] : memref<32x1xf32, #tpu.memory_space<vmem>>, vector<32x1xf32>
    %21 = vector.broadcast %20 : vector<32x1xf32> to vector<32x256xf32>
    %22 = arith.addf %19, %21 : vector<32x256xf32>
    %cst_21 = arith.constant 0.000000e+00 : f32
    %23 = vector.broadcast %cst_21 : f32 to vector<32x256xf32>
    %24 = arith.maximumf %22, %23 : vector<32x256xf32>
    %25 = arith.truncf %24 : vector<32x256xf32> to vector<32x256xbf16>
    %c0_22 = arith.constant 0 : index
    %c32 = arith.constant 32 : index
    %26 = vector.load %arg8[%c0_22, %c32] : memref<64x64xbf16, #tpu.memory_space<vmem>>, vector<64x32xbf16>
    %cst_23 = arith.constant dense<0.000000e+00> : vector<64x256xf32>
    %27 = tpu.matmul %26, %25, %cst_23 {dimension_numbers = #tpu.dot_dimension_numbers<[1], [0], [0], [1], [0, 0, 1, 1], [], []>} : vector<64x32xbf16>, vector<32x256xbf16>, vector<64x256xf32> -> vector<64x256xf32>
    %28 = arith.addf %14, %27 : vector<64x256xf32>
    %c0_24 = arith.constant 0 : index
    %c0_25 = arith.constant 0 : index
    %29 = vector.load %arg9[%c0_24, %c0_25] : memref<64x1xf32, #tpu.memory_space<vmem>>, vector<64x1xf32>
    %30 = vector.broadcast %29 : vector<64x1xf32> to vector<64x256xf32>
    %31 = arith.addf %28, %30 : vector<64x256xf32>
    %cst_26 = arith.constant 0.000000e+00 : f32
    %32 = vector.broadcast %cst_26 : f32 to vector<64x256xf32>
    %33 = arith.maximumf %31, %32 : vector<64x256xf32>
    %34 = arith.truncf %33 : vector<64x256xf32> to vector<64x256xbf16>
    %c0_27 = arith.constant 0 : index
    %c0_28 = arith.constant 0 : index
    %c0_29 = arith.constant 0 : index
    %35 = vector.load %arg10[%c0_27, %c0_28, %c0_29] : memref<1x64x256xbf16, #tpu.memory_space<vmem>>, vector<1x64x256xbf16>
    %36 = vector.shape_cast %35 : vector<1x64x256xbf16> to vector<64x256xbf16>
    %37 = vector.shape_cast %34 : vector<64x256xbf16> to vector<1x64x256xbf16>
    tpu.vector_store %arg10[%c0_27, %c0_28, %c0_29], %37 {strides = array<i32>} : memref<1x64x256xbf16, #tpu.memory_space<vmem>>, vector<1x64x256xbf16>,
    return
  }
  func.func @transform_0(%arg0: i32, %arg1: i32) -> (i32, i32, i32) {
    %c0_i32 = arith.constant 0 : i32
    %c0_i32_0 = arith.constant 0 : i32
    return %arg0, %c0_i32, %arg1 : i32, i32, i32
  }
  func.func @transform_1(%arg0: i32, %arg1: i32) -> (i32, i32, i32) {
    %c0_i32 = arith.constant 0 : i32
    %c0_i32_0 = arith.constant 0 : i32
    return %arg0, %c0_i32, %arg1 : i32, i32, i32
  }
  func.func @transform_2(%arg0: i32, %arg1: i32) -> (i32, i32, i32) {
    %c0_i32 = arith.constant 0 : i32
    %c0_i32_0 = arith.constant 0 : i32
    %c0_i32_1 = arith.constant 0 : i32
    %c0_i32_2 = arith.constant 0 : i32
    return %c0_i32, %c0_i32_0, %c0_i32_1 : i32, i32, i32
  }
  func.func @transform_3(%arg0: i32, %arg1: i32) -> (i32, i32) {
    %c0_i32 = arith.constant 0 : i32
    %c0_i32_0 = arith.constant 0 : i32
    %c0_i32_1 = arith.constant 0 : i32
    return %c0_i32, %c0_i32_0 : i32, i32
  }
  func.func @transform_4(%arg0: i32, %arg1: i32) -> (i32, i32, i32) {
    %c0_i32 = arith.constant 0 : i32
    %c0_i32_0 = arith.constant 0 : i32
    %c0_i32_1 = arith.constant 0 : i32
    %c0_i32_2 = arith.constant 0 : i32
    return %c0_i32, %c0_i32_0, %c0_i32_1 : i32, i32, i32
  }
  func.func @transform_5(%arg0: i32, %arg1: i32) -> (i32, i32) {
    %c0_i32 = arith.constant 0 : i32
    %c0_i32_0 = arith.constant 0 : i32
    %c0_i32_1 = arith.constant 0 : i32
    return %c0_i32, %c0_i32_0 : i32, i32
  }
  func.func @transform_6(%arg0: i32, %arg1: i32) -> (i32, i32) {
    %c0_i32 = arith.constant 0 : i32
    %c0_i32_0 = arith.constant 0 : i32
    %c0_i32_1 = arith.constant 0 : i32
    return %c0_i32, %c0_i32_0 : i32, i32
  }
  func.func @transform_7(%arg0: i32, %arg1: i32) -> (i32, i32) {
    %c0_i32 = arith.constant 0 : i32
    %c0_i32_0 = arith.constant 0 : i32
    %c0_i32_1 = arith.constant 0 : i32
    return %c0_i32, %c0_i32_0 : i32, i32
  }
  func.func @transform_8(%arg0: i32, %arg1: i32) -> (i32, i32, i32) {
    %c0_i32 = arith.constant 0 : i32
    %c0_i32_0 = arith.constant 0 : i32
    return %arg0, %c0_i32, %arg1 : i32, i32, i32
  }
}

</mosaic_0001>

<llo_original>
// kernel: tpu_custom_call.1
$region0: #{tpu_custom_call.1}
  #allocation0 [shape = 'u32[]', space=smem, size = 0x4, offset = 0x4, fixed_abs, tag = 'smem constant byte address 0x4 - core index']
  #allocation1 [shape = 'u32[144,128]{1,0:T(1,128)}', space=vmem, size = 0x12000, scoped, tag = 'internal scratch']
  %s0 = inlined_call_operand.vmem [shape: bf16[2,32,256], index: 0, kind: input, shape index: {}]
  %s1 = inlined_call_operand.vmem [shape: bf16[2,32,256], index: 1, kind: input, shape index: {}]
  %s2 = inlined_call_operand.hbm [shape: bf16[1,32,32], index: 2, kind: input, shape index: {}]
  %s3 = inlined_call_operand.vmem [shape: f32[32,1], index: 3, kind: input, shape index: {}]
  %s4 = inlined_call_operand.vmem [shape: bf16[1,32,32], index: 4, kind: input, shape index: {}]
  %s5 = inlined_call_operand.vmem [shape: f32[32,1], index: 5, kind: input, shape index: {}]
  %s6 = inlined_call_operand.hbm [shape: bf16[64,64], index: 6, kind: input, shape index: {}]
  %s7 = inlined_call_operand.vmem [shape: f32[64,1], index: 7, kind: input, shape index: {}]
  %s8 = inlined_call_operand.hbm [shape: bf16[2,64,256], index: 8, kind: output, shape index: {}]
  %s9 = sld [smem:[#allocation0]]
  $region73: #{tpu_custom_call.1} parent=0
    _
  %s11 = ssub.s32 1, %s9
  %s12 = scalar_select 0, %s11, %s9
  $region1: #{tpu_custom_call.1} parent=0
    #allocation2 [shape = 'u8[8192]{0}', space=vmem, size = 0x2000, scoped, tag = 'input window, operand 2, single buffered']
    #allocation3 [shape = 's32[2]{0}', space=sflag, size = 0x8, scoped, tag = 'scoped memory for tpu_custom_call.1']
    #allocation4 [shape = 's32[2]{0}', space=sflag, size = 0x8, scoped, tag = 'scoped memory for tpu_custom_call.1']
    #allocation5 [shape = 'u8[16384]{0}', space=vmem, size = 0x4000, scoped, tag = 'input window, operand 6, single buffered']
    #allocation6 [shape = 's32[1]{0}', space=sflag, size = 0x4, scoped, tag = 'scoped memory for tpu_custom_call.1']
    #allocation7 [shape = 'u8[65536]{0}', space=vmem, size = 0x10000, scoped, tag = 'output window, operand 0']
    %13 = vsyncpa [#allocation3], 0
    %14 = vsyncpa [#allocation6], 0
    %15 = vsyncpa [#allocation4], 0
    %s16 = scalar_lea.sflag [#allocation4], 1
    %17 = vsyncpa %s16, 0
    loop: start=0, step=1, limit=4
    $region2: #{tpu_custom_call.1} parent=1 // loop_pre_header
      _
    $region3: #{tpu_custom_call.1} parent=1 // loop_header
      %s19 = sphi 0, %s23
      %p20 = scmp.ge.s32.totalorder %s19, 4
      %s26 = sphi 0, %s38
      %s27 = sphi 0, %s34
      %s28 = sphi 0, %s26
      %s29 = sphi 0, %s27
      %s30 = sphi 0, %s28
      %s31 = sphi 0, %s29
      %s43 = sphi 0, %s45
      %s46 = sphi 0, %s43
      %s47 = sphi 0, %s46
      %s63 = sphi 0, %s47
      %s71 = sphi 0, %s73
      %s74 = sphi 0, %s71
      %s75 = sphi 0, %s74
      %s91 = sphi 0, %s75
      %s95 = sphi 0, %s95
      %s97 = sphi 0, %s95
      %s98 = sphi 0, %s97
      %s112 = sphi 0, %s98
      %s116 = sphi 0, %s116
      %s118 = sphi 0, %s116
      %s119 = sphi 0, %s118
      %s133 = sphi 0, %s119
      %s137 = sphi 0, %s137
      %s139 = sphi 0, %s137
      %s140 = sphi 0, %s139
      %s154 = sphi 0, %s140
      %s158 = sphi 0, %s158
      %s160 = sphi 0, %s158
      %s161 = sphi 0, %s160
      %s175 = sphi 0, %s161
      %s179 = sphi 0, %s179
      %s181 = sphi 0, %s179
      %s182 = sphi 0, %s181
      %s196 = sphi 0, %s182
      %s200 = sphi 0, %s200
      %s202 = sphi 0, %s200
      %s203 = sphi 0, %s202
      %s217 = sphi 0, %s203
      %s225 = sphi 0, %s227
      %s228 = sphi 0, %s225
      %s229 = sphi 0, %s228
      %s245 = sphi 0, %s229
    $region4: #{tpu_custom_call.1} parent=1 // loop_header_branch
      %22 = sbr.rel (%p20) target = $region8
    $region5: #{tpu_custom_call.1} parent=1 // loop_body
      %s24 = ssub.s32 %s19, 1
      %s25 = ssub.s32 %s19, 2
      %s32 = sadd.s32 1, %s27
      %p33 = scmp.ge.s32.totalorder %s32, 1
      %s34 = scalar_select %p33, 0, %s32
      %s35 = sadd.s32 1, %s26
      %s36 = scalar_select %p33, %s35, %s26
      %p37 = scmp.ge.s32.totalorder %s36, 2
      %s38 = scalar_select %p37, 0, %s36
      %s39 = ssub.s32 %s26, %s38
      %s40 = ssub.s32 %s27, %s34
      %s41 = sor.u32 %s39, %s40
      %p42 = scmp.eq.s32.totalorder %s41, 0
      %s44 = sadd.s32 %s43, 1
      %s45 = scalar_select %p42, %s43, %s44
      %p48 = pneg %p42
      %p49 = scmp.eq.s32.totalorder %s19, 1
      %p50 = por %p48, %p49
      %p51 = scmp.ne.s32.totalorder %s43, %s46
      %p52 = scmp.eq.s32.totalorder %s19, 0
      %p53 = por %p51, %p52
      %p54 = scmp.ne.s32.totalorder %s43, %s46
      %p55 = scmp.eq.s32.totalorder %s24, 1
      %p56 = por %p54, %p55
      %p57 = scmp.ne.s32.totalorder %s46, %s47
      %p58 = scmp.eq.s32.totalorder %s24, 0
      %p59 = por %p57, %p58
      %p60 = scmp.ne.s32.totalorder %s46, %s47
      %p61 = scmp.eq.s32.totalorder %s25, 1
      %p62 = por %p60, %p61
      %p64 = scmp.ne.s32.totalorder %s47, %s63
      %p65 = scmp.eq.s32.totalorder %s25, 0
      %p66 = por %p64, %p65
      %s67 = ssub.s32 %s26, %s38
      %s68 = ssub.s32 %s27, %s34
      %s69 = sor.u32 %s67, %s68
      %p70 = scmp.eq.s32.totalorder %s69, 0
      %s72 = sadd.s32 %s71, 1
      %s73 = scalar_select %p70, %s71, %s72
      %p76 = pneg %p70
      %p77 = scmp.eq.s32.totalorder %s19, 1
      %p78 = por %p76, %p77
      %p79 = scmp.ne.s32.totalorder %s71, %s74
      %p80 = scmp.eq.s32.totalorder %s19, 0
      %p81 = por %p79, %p80
      %p82 = scmp.ne.s32.totalorder %s71, %s74
      %p83 = scmp.eq.s32.totalorder %s24, 1
      %p84 = por %p82, %p83
      %p85 = scmp.ne.s32.totalorder %s74, %s75
      %p86 = scmp.eq.s32.totalorder %s24, 0
      %p87 = por %p85, %p86
      %p88 = scmp.ne.s32.totalorder %s74, %s75
      %p89 = scmp.eq.s32.totalorder %s25, 1
      %p90 = por %p88, %p89
      %p92 = scmp.ne.s32.totalorder %s75, %s91
      %p93 = scmp.eq.s32.totalorder %s25, 0
      %p94 = por %p92, %p93
      %s96 = sadd.s32 %s95, 1
      %p99 = scmp.eq.s32.totalorder %s19, 1
      %p100 = scmp.ne.s32.totalorder %s95, %s97
      %p101 = scmp.eq.s32.totalorder %s19, 0
      %p102 = por %p100, %p101
      %p103 = scmp.ne.s32.totalorder %s95, %s97
      %p104 = scmp.eq.s32.totalorder %s24, 1
      %p105 = por %p103, %p104
      %p106 = scmp.ne.s32.totalorder %s97, %s98
      %p107 = scmp.eq.s32.totalorder %s24, 0
      %p108 = por %p106, %p107
      %p109 = scmp.ne.s32.totalorder %s97, %s98
      %p110 = scmp.eq.s32.totalorder %s25, 1
      %p111 = por %p109, %p110
      %p113 = scmp.ne.s32.totalorder %s98, %s112
      %p114 = scmp.eq.s32.totalorder %s25, 0
      %p115 = por %p113, %p114
      %s117 = sadd.s32 %s116, 1
      %p120 = scmp.eq.s32.totalorder %s19, 1
      %p121 = scmp.ne.s32.totalorder %s116, %s118
      %p122 = scmp.eq.s32.totalorder %s19, 0
      %p123 = por %p121, %p122
      %p124 = scmp.ne.s32.totalorder %s116, %s118
      %p125 = scmp.eq.s32.totalorder %s24, 1
      %p126 = por %p124, %p125
      %p127 = scmp.ne.s32.totalorder %s118, %s119
      %p128 = scmp.eq.s32.totalorder %s24, 0
      %p129 = por %p127, %p128
      %p130 = scmp.ne.s32.totalorder %s118, %s119
      %p131 = scmp.eq.s32.totalorder %s25, 1
      %p132 = por %p130, %p131
      %p134 = scmp.ne.s32.totalorder %s119, %s133
      %p135 = scmp.eq.s32.totalorder %s25, 0
      %p136 = por %p134, %p135
      %s138 = sadd.s32 %s137, 1
      %p141 = scmp.eq.s32.totalorder %s19, 1
      %p142 = scmp.ne.s32.totalorder %s137, %s139
      %p143 = scmp.eq.s32.totalorder %s19, 0
      %p144 = por %p142, %p143
      %p145 = scmp.ne.s32.totalorder %s137, %s139
      %p146 = scmp.eq.s32.totalorder %s24, 1
      %p147 = por %p145, %p146
      %p148 = scmp.ne.s32.totalorder %s139, %s140
      %p149 = scmp.eq.s32.totalorder %s24, 0
      %p150 = por %p148, %p149
      %p151 = scmp.ne.s32.totalorder %s139, %s140
      %p152 = scmp.eq.s32.totalorder %s25, 1
      %p153 = por %p151, %p152
      %p155 = scmp.ne.s32.totalorder %s140, %s154
      %p156 = scmp.eq.s32.totalorder %s25, 0
      %p157 = por %p155, %p156
      %s159 = sadd.s32 %s158, 1
      %p162 = scmp.eq.s32.totalorder %s19, 1
      %p163 = scmp.ne.s32.totalorder %s158, %s160
      %p164 = scmp.eq.s32.totalorder %s19, 0
      %p165 = por %p163, %p164
      %p166 = scmp.ne.s32.totalorder %s158, %s160
      %p167 = scmp.eq.s32.totalorder %s24, 1
      %p168 = por %p166, %p167
      %p169 = scmp.ne.s32.totalorder %s160, %s161
      %p170 = scmp.eq.s32.totalorder %s24, 0
      %p171 = por %p169, %p170
      %p172 = scmp.ne.s32.totalorder %s160, %s161
      %p173 = scmp.eq.s32.totalorder %s25, 1
      %p174 = por %p172, %p173
      %p176 = scmp.ne.s32.totalorder %s161, %s175
      %p177 = scmp.eq.s32.totalorder %s25, 0
      %p178 = por %p176, %p177
      %s180 = sadd.s32 %s179, 1
      %p183 = scmp.eq.s32.totalorder %s19, 1
      %p184 = scmp.ne.s32.totalorder %s179, %s181
      %p185 = scmp.eq.s32.totalorder %s19, 0
      %p186 = por %p184, %p185
      %p187 = scmp.ne.s32.totalorder %s179, %s181
      %p188 = scmp.eq.s32.totalorder %s24, 1
      %p189 = por %p187, %p188
      %p190 = scmp.ne.s32.totalorder %s181, %s182
      %p191 = scmp.eq.s32.totalorder %s24, 0
      %p192 = por %p190, %p191
      %p193 = scmp.ne.s32.totalorder %s181, %s182
      %p194 = scmp.eq.s32.totalorder %s25, 1
      %p195 = por %p193, %p194
      %p197 = scmp.ne.s32.totalorder %s182, %s196
      %p198 = scmp.eq.s32.totalorder %s25, 0
      %p199 = por %p197, %p198
      %s201 = sadd.s32 %s200, 1
      %p204 = scmp.eq.s32.totalorder %s19, 1
      %p205 = scmp.ne.s32.totalorder %s200, %s202
      %p206 = scmp.eq.s32.totalorder %s19, 0
      %p207 = por %p205, %p206
      %p208 = scmp.ne.s32.totalorder %s200, %s202
      %p209 = scmp.eq.s32.totalorder %s24, 1
      %p210 = por %p208, %p209
      %p211 = scmp.ne.s32.totalorder %s202, %s203
      %p212 = scmp.eq.s32.totalorder %s24, 0
      %p213 = por %p211, %p212
      %p214 = scmp.ne.s32.totalorder %s202, %s203
      %p215 = scmp.eq.s32.totalorder %s25, 1
      %p216 = por %p214, %p215
      %p218 = scmp.ne.s32.totalorder %s203, %s217
      %p219 = scmp.eq.s32.totalorder %s25, 0
      %p220 = por %p218, %p219
      %s221 = ssub.s32 %s26, %s38
      %s222 = ssub.s32 %s27, %s34
      %s223 = sor.u32 %s221, %s222
      %p224 = scmp.eq.s32.totalorder %s223, 0
      %s226 = sadd.s32 %s225, 1
      %s227 = scalar_select %p224, %s225, %s226
      %p230 = pneg %p224
      %p231 = scmp.eq.s32.totalorder %s19, 1
      %p232 = por %p230, %p231
      %p233 = scmp.ne.s32.totalorder %s225, %s228
      %p234 = scmp.eq.s32.totalorder %s19, 0
      %p235 = por %p233, %p234
      %p236 = scmp.ne.s32.totalorder %s225, %s228
      %p237 = scmp.eq.s32.totalorder %s24, 1
      %p238 = por %p236, %p237
      %p239 = scmp.ne.s32.totalorder %s228, %s229
      %p240 = scmp.eq.s32.totalorder %s24, 0
      %p241 = por %p239, %p240
      %p242 = scmp.ne.s32.totalorder %s228, %s229
      %p243 = scmp.eq.s32.totalorder %s25, 1
      %p244 = por %p242, %p243
      %p246 = scmp.ne.s32.totalorder %s229, %s245
      %p247 = scmp.eq.s32.totalorder %s25, 0
      %p248 = por %p246, %p247
      %p249 = scmp.le.s32.totalorder 1, %s19
      %p250 = scmp.lt.s32.totalorder %s19, 3
      %p251 = pnand %p249, %p250
      %p252 = pneg %p251
      // Predicated region
      $region9: #{tpu_custom_call.1} parent=5 // pred_check
        _
      $region10: #{tpu_custom_call.1} parent=5 // pred_check_branch
        %254 = sbr.rel (%p251) target = $region12
      $region11: #{tpu_custom_call.1} parent=5 // pred_region
        %s255 = ssub.s32 %s19, 1
        // Predicated region
        $region13: #{tpu_custom_call.1} parent=11 // pred_check
          %p256 = pneg %p108
        $region14: #{tpu_custom_call.1} parent=11 // pred_check_branch
          %258 = sbr.rel (%p256) target = $region16
        $region15: #{tpu_custom_call.1} parent=11 // pred_region
          %s260 = ssub.s32 256, 256
          %261 = vsyncadd [#allocation3], %s260
          %s262 = sshll.u32 [#allocation2], 4
          %s263 = int_to_ptr.vmem [resolvable:$true] %s262
          %268 = dma.hbm_to_vmem [thread:$0]  %s2, 256, %s263, [#allocation3], 64, 64, 4
        $region16: #{tpu_custom_call.1} parent=11 // pred_fallthru
          _
        // Predicated region
        $region17: #{tpu_custom_call.1} parent=11 // pred_check
          %p269 = pneg %p129
        $region18: #{tpu_custom_call.1} parent=11 // pred_check_branch
          %271 = sbr.rel (%p269) target = $region20
        $region19: #{tpu_custom_call.1} parent=11 // pred_region
          _
        $region20: #{tpu_custom_call.1} parent=11 // pred_fallthru
          _
        // Predicated region
        $region21: #{tpu_custom_call.1} parent=11 // pred_check
          %p272 = pneg %p150
        $region22: #{tpu_custom_call.1} parent=11 // pred_check_branch
          %274 = sbr.rel (%p272) target = $region24
        $region23: #{tpu_custom_call.1} parent=11 // pred_region
          _
        $region24: #{tpu_custom_call.1} parent=11 // pred_fallthru
          _
        // Predicated region
        $region25: #{tpu_custom_call.1} parent=11 // pred_check
          %p275 = pneg %p171
        $region26: #{tpu_custom_call.1} parent=11 // pred_check_branch
          %277 = sbr.rel (%p275) target = $region28
        $region27: #{tpu_custom_call.1} parent=11 // pred_region
          _
        $region28: #{tpu_custom_call.1} parent=11 // pred_fallthru
          _
        // Predicated region
        $region29: #{tpu_custom_call.1} parent=11 // pred_check
          %p278 = pneg %p192
        $region30: #{tpu_custom_call.1} parent=11 // pred_check_branch
          %280 = sbr.rel (%p278) target = $region32
        $region31: #{tpu_custom_call.1} parent=11 // pred_region
          %s282 = ssub.s32 512, 512
          %283 = vsyncadd [#allocation6], %s282
          %s284 = sshll.u32 [#allocation5], 4
          %s285 = int_to_ptr.vmem [resolvable:$true] %s284
          %290 = dma.hbm_to_vmem [thread:$0]  %s6, 512, %s285, [#allocation6], 64, 64, 4
        $region32: #{tpu_custom_call.1} parent=11 // pred_fallthru
          _
        // Predicated region
        $region33: #{tpu_custom_call.1} parent=11 // pred_check
          %p291 = pneg %p213
        $region34: #{tpu_custom_call.1} parent=11 // pred_check_branch
          %293 = sbr.rel (%p291) target = $region36
        $region35: #{tpu_custom_call.1} parent=11 // pred_region
          _
        $region36: #{tpu_custom_call.1} parent=11 // pred_fallthru
          _
      $region12: #{tpu_custom_call.1} parent=5 // pred_fallthru
        _
      %p294 = scmp.lt.s32.totalorder %s19, 2
      // Predicated region
      $region37: #{tpu_custom_call.1} parent=5 // pred_check
        %p295 = pneg %p294
      $region38: #{tpu_custom_call.1} parent=5 // pred_check_branch
        %297 = sbr.rel (%p295) target = $region40
      $region39: #{tpu_custom_call.1} parent=5 // pred_region
        // Predicated region
        $region41: #{tpu_custom_call.1} parent=39 // pred_check
          %p298 = pneg %p53
        $region42: #{tpu_custom_call.1} parent=39 // pred_check_branch
          %300 = sbr.rel (%p298) target = $region44
        $region43: #{tpu_custom_call.1} parent=39 // pred_region
          %s301 = smul.u32 2, %s27
          %p302 = scmp.lt.s32.totalorder %s26, 1
          %s303 = scalar_select %p302, %s26, 1
          %p304 = scmp.lt.s32.totalorder %s301, 1
          %s305 = scalar_select %p304, %s301, 1
          %s306 = smul.addr %s303, 8
          %s307 = sadd.s32 %s305, %s306
          %s308 = smul.addr %s307, 4
          %s309 = scalar_lea.vmem %s0, %s308
          %s310 = smul.u32 2, %s27
        $region44: #{tpu_custom_call.1} parent=39 // pred_fallthru
          _
        // Predicated region
        $region45: #{tpu_custom_call.1} parent=39 // pred_check
          %p311 = pneg %p81
        $region46: #{tpu_custom_call.1} parent=39 // pred_check_branch
          %313 = sbr.rel (%p311) target = $region48
        $region47: #{tpu_custom_call.1} parent=39 // pred_region
          %s314 = smul.u32 2, %s27
          %p315 = scmp.lt.s32.totalorder %s26, 1
          %s316 = scalar_select %p315, %s26, 1
          %p317 = scmp.lt.s32.totalorder %s314, 1
          %s318 = scalar_select %p317, %s314, 1
          %s319 = smul.addr %s316, 8
          %s320 = sadd.s32 %s318, %s319
          %s321 = smul.addr %s320, 4
          %s322 = scalar_lea.vmem %s1, %s321
          %s323 = smul.u32 2, %s27
        $region48: #{tpu_custom_call.1} parent=39 // pred_fallthru
          _
      $region40: #{tpu_custom_call.1} parent=5 // pred_fallthru
        _
      %p324 = scmp.le.s32.totalorder 1, %s19
      %p325 = scmp.lt.s32.totalorder %s19, 3
      %p326 = pnand %p324, %p325
      %p327 = pneg %p326
      // Predicated region
      $region49: #{tpu_custom_call.1} parent=5 // pred_check
        _
      $region50: #{tpu_custom_call.1} parent=5 // pred_check_branch
        %329 = sbr.rel (%p326) target = $region52
      $region51: #{tpu_custom_call.1} parent=5 // pred_region
        %s330 = ssub.s32 %s19, 1
        // Predicated region
        $region53: #{tpu_custom_call.1} parent=51 // pred_check
          %p331 = pneg %p108
        $region54: #{tpu_custom_call.1} parent=51 // pred_check_branch
          %333 = sbr.rel (%p331) target = $region56
        $region55: #{tpu_custom_call.1} parent=51 // pred_region
          %334 = dma.done [#allocation3], 256
        $region56: #{tpu_custom_call.1} parent=51 // pred_fallthru
          _
        // Predicated region
        $region57: #{tpu_custom_call.1} parent=51 // pred_check
          %p335 = pneg %p192
        $region58: #{tpu_custom_call.1} parent=51 // pred_check_branch
          %337 = sbr.rel (%p335) target = $region60
        $region59: #{tpu_custom_call.1} parent=51 // pred_region
          %338 = dma.done [#allocation6], 512
        $region60: #{tpu_custom_call.1} parent=51 // pred_fallthru
          _
        %s339 = smul.u32 2, %s29
        %p340 = scmp.lt.s32.totalorder %s28, 1
        %s341 = scalar_select %p340, %s28, 1
        %p342 = scmp.lt.s32.totalorder %s339, 1
        %s343 = scalar_select %p342, %s339, 1
        %s344 = smul.addr %s341, 8
        %s345 = sadd.s32 %s343, %s344
        %s346 = smul.addr %s345, 4
        %s347 = scalar_lea.vmem %s0, %s346
        %p348 = pneg %p59
        %p349 = pneg %p56
        %s350 = smul.u32 2, %s29
        %p351 = scmp.lt.s32.totalorder %s28, 1
        %s352 = scalar_select %p351, %s28, 1
        %p353 = scmp.lt.s32.totalorder %s350, 1
        %s354 = scalar_select %p353, %s350, 1
        %s355 = smul.addr %s352, 8
        %s356 = sadd.s32 %s354, %s355
        %s357 = smul.addr %s356, 4
        %s358 = scalar_lea.vmem %s1, %s357
        %p359 = pneg %p87
        %p360 = pneg %p84
        %p361 = pneg %p108
        %p362 = pneg %p105
        %p363 = pneg %p129
        %p364 = pneg %p126
        %p365 = pneg %p150
        %p366 = pneg %p147
        %p367 = pneg %p171
        %p368 = pneg %p168
        %p369 = pneg %p192
        %p370 = pneg %p189
        %p371 = pneg %p213
        %p372 = pneg %p210
        %p373 = pneg %p241
        %p374 = pneg %p238
        %s375 = sand.u32 %s228, 1
        %s376 = scalar_lea.sflag [#allocation4], %s375
        %s377 = sand.u32 %s228, 1
        %s378 = smul.addr %s377, 64
        %s379 = scalar_lea.vmem [#allocation7], %s378
        %s380 = smul.u32 2, %s29
        %p381 = scmp.lt.s32.totalorder %s28, 1
        %s382 = scalar_select %p381, %s28, 1
        %p383 = scmp.lt.s32.totalorder %s380, 1
        %s384 = scalar_select %p383, %s380, 1
        %s385 = smul.addr %s382, 8
        %s386 = sadd.s32 %s384, %s385
        %s387 = smul.addr %s386, 4
        %s388 = scalar_lea.vmem %s0, %s387
        %s389 = smul.u32 2, %s29
        %s390 = smul.u32 2, %s29
        %p391 = scmp.lt.s32.totalorder %s28, 1
        %s392 = scalar_select %p391, %s28, 1
        %p393 = scmp.lt.s32.totalorder %s390, 1
        %s394 = scalar_select %p393, %s390, 1
        %s395 = smul.addr %s392, 8
        %s396 = sadd.s32 %s394, %s395
        %s397 = smul.addr %s396, 4
        %s398 = scalar_lea.vmem %s1, %s397
        %s399 = smul.u32 2, %s29
        %s400 = smul.u32 2, %s29
        %v402 = vld [vmem:[%s388] sm:$0xff]
        %v403 = vld [vmem:[%s388 + $0x8] sm:$0xff]
        %v404 = vld [vmem:[%s388 + $0x10] sm:$0xff]
        %v405 = vld [vmem:[%s388 + $0x18] sm:$0xff]
        %v406 = vld [vmem:[#allocation2] sm:$0xf]
        %v407 = vld [vmem:[#allocation2 + $0x4] sm:$0xf]
        %v408 = vld [vmem:[#allocation2 + $0x8] sm:$0xf]
        %v409 = vld [vmem:[#allocation2 + $0xc] sm:$0xf]
        %v410 = vld [vmem:[%s3] sm:$0xff]
        %v411 = vld [vmem:[%s3 + $0x8] sm:$0xff]
        %v412 = vld [vmem:[%s3 + $0x10] sm:$0xff]
        %v413 = vld [vmem:[%s3 + $0x18] sm:$0xff]
        %415 = vset.pattern.permute.xlu0 0
        %416 = vperm.xlu0 %415, %v410
        %v417 = vpop.permute.xlu0 %416
        %420 = vset.pattern.permute.xlu0 0
        %421 = vperm.xlu0 %420, %v411
        %v422 = vpop.permute.xlu0 %421
        %425 = vset.pattern.permute.xlu0 0
        %426 = vperm.xlu0 %425, %v412
        %v427 = vpop.permute.xlu0 %426
        %430 = vset.pattern.permute.xlu0 0
        %431 = vperm.xlu0 %430, %v413
        %v432 = vpop.permute.xlu0 %431
        %v438 = vunpack.c.l.b16 %v406
        %v439 = vunpack.c.l.b16 %v407
        %v440 = vunpack.c.l.b16 %v408
        %v441 = vunpack.c.l.b16 %v409
        %v442 = vpack.c.b16 %v439, %v438
        %v443 = vpack.c.b16 %v441, %v440
        %v448 = vunpack.c.l.b16 %v402
        %v449 = vunpack.c.h.b16 %v402
        %v450 = vunpack.c.l.b16 %v403
        %v451 = vunpack.c.h.b16 %v403
        %v452 = vunpack.c.l.b16 %v404
        %v453 = vunpack.c.h.b16 %v404
        %v454 = vunpack.c.l.b16 %v405
        %v455 = vunpack.c.h.b16 %v405
        %v456 = vpack.c.b16 %v450, %v448
        %v457 = vpack.c.b16 %v451, %v449
        %v458 = vpack.c.b16 %v454, %v452
        %v459 = vpack.c.b16 %v455, %v453
        %vm464 = vcmask 261120
        %v466 = vsel %vm464, %v442, 0
        %v469 = vsel %vm464, %v443, 0
        %471 = vmatprep.subr.bf16.mxu0 %v457
        %472 = vmatpush1.bf16.msra.mxu0 %v456
        %473 = vmatprep.subr.bf16.mxu0 %v459
        %474 = vmatpush1.bf16.msra.mxu0 %v458
        %475 = vmatprep.subr.bf16.mxu0 0
        %476 = vmatpush1.bf16.msra.mxu0 0
        %477 = vmatprep.subr.bf16.mxu0 0
        %478 = vmatpush1.bf16.msra.mxu0 0
        %479 = vmatprep.subr.bf16.mxu0 0
        %480 = vmatpush1.bf16.msra.mxu0 0
        %481 = vmatprep.subr.bf16.mxu0 0
        %482 = vmatpush1.bf16.msra.mxu0 0
        %483 = vmatprep.subr.bf16.mxu0 0
        %484 = vmatpush1.bf16.msra.mxu0 0
        %485 = vmatprep.subr.bf16.mxu0 0
        %486 = vmatpush1.bf16.msra.mxu0 0
        %487 = vmatprep.subr.bf16.mxu0 0
        %488 = vmatpush1.bf16.msra.mxu0 0
        %489 = vmatprep.subr.bf16.mxu0 0
        %490 = vmatpush1.bf16.msra.mxu0 0
        %491 = vmatprep.subr.bf16.mxu0 0
        %492 = vmatpush1.bf16.msra.mxu0 0
        %493 = vmatprep.subr.bf16.mxu0 0
        %494 = vmatpush1.bf16.msra.mxu0 0
        %495 = vmatprep.subr.bf16.mxu0 0
        %496 = vmatpush1.bf16.msra.mxu0 0
        %497 = vmatprep.subr.bf16.mxu0 0
        %498 = vmatpush1.bf16.msra.mxu0 0
        %499 = vmatprep.subr.bf16.mxu0 0
        %500 = vmatpush1.bf16.msra.mxu0 0
        %501 = vmatprep.subr.bf16.mxu0 0
        %502 = vmatpush1.bf16.msra.mxu0 0
        %503 = vmatprep.mubr.bf16.mxu0 0
        %504 = vmatmul.mubr.bf16.gmra.mrb[0].mxu0 %v466
        %v505 = vpop.f32.mrb[0].mxu0
        %v506 = vadd.f32 %v417, %v505
        %v507 = vpop.f32.mrb[0].mxu0
        %v508 = vadd.f32 %v417, %v507
        %v509 = vpop.f32.mrb[0].mxu0
        %v510 = vadd.f32 %v422, %v509
        %v511 = vpop.f32.mrb[0].mxu0
        %v512 = vadd.f32 %v422, %v511
        %513 = vmatprep.mubr.bf16.mxu0 0
        %514 = vmatmul.mubr.bf16.gmra.mrb[0].mxu0 %v469
        %v515 = vpop.f32.mrb[0].mxu0
        %v516 = vadd.f32 %v427, %v515
        %v517 = vpop.f32.mrb[0].mxu0
        %v518 = vadd.f32 %v427, %v517
        %v519 = vpop.f32.mrb[0].mxu0
        %v520 = vadd.f32 %v432, %v519
        %v521 = vpop.f32.mrb[0].mxu0
        %v522 = vadd.f32 %v432, %v521
        %523 = vdwg.mxu0
        %v524 = vmax.f32 %v506, 0.0
        %v525 = vmax.f32 %v508, 0.0
        %v526 = vmax.f32 %v510, 0.0
        %v527 = vmax.f32 %v512, 0.0
        %v528 = vmax.f32 %v516, 0.0
        %v529 = vmax.f32 %v518, 0.0
        %v530 = vmax.f32 %v520, 0.0
        %v531 = vmax.f32 %v522, 0.0
        %v532 = vpack.c.bf16 %v526, %v524
        %v533 = vpack.c.bf16 %v527, %v525
        %v534 = vpack.c.bf16 %v530, %v528
        %v535 = vpack.c.bf16 %v531, %v529
        %v536 = vld [vmem:[#allocation5] sm:$0xf]
        %v537 = vld [vmem:[#allocation5 + $0x4] sm:$0xf]
        %v538 = vld [vmem:[#allocation5 + $0x8] sm:$0xf]
        %v539 = vld [vmem:[#allocation5 + $0xc] sm:$0xf]
        %v540 = vld [vmem:[#allocation5 + $0x10] sm:$0xf]
        %v541 = vld [vmem:[#allocation5 + $0x14] sm:$0xf]
        %v542 = vld [vmem:[#allocation5 + $0x18] sm:$0xf]
        %v543 = vld [vmem:[#allocation5 + $0x1c] sm:$0xf]
        %v544 = vld [vmem:[%s398] sm:$0xff]
        %v545 = vld [vmem:[%s398 + $0x8] sm:$0xff]
        %v546 = vld [vmem:[%s398 + $0x10] sm:$0xff]
        %v547 = vld [vmem:[%s398 + $0x18] sm:$0xff]
        %v548 = vld [vmem:[%s4] sm:$0xf]
        %v549 = vld [vmem:[%s4 + $0x4] sm:$0xf]
        %v550 = vld [vmem:[%s4 + $0x8] sm:$0xf]
        %v551 = vld [vmem:[%s4 + $0xc] sm:$0xf]
        %v552 = vld [vmem:[%s5] sm:$0xff]
        %v553 = vld [vmem:[%s5 + $0x8] sm:$0xff]
        %v554 = vld [vmem:[%s5 + $0x10] sm:$0xff]
        %v555 = vld [vmem:[%s5 + $0x18] sm:$0xff]
        %557 = vset.pattern.permute.xlu0 0
        %558 = vperm.xlu0 %557, %v552
        %v559 = vpop.permute.xlu0 %558
        %562 = vset.pattern.permute.xlu0 0
        %563 = vperm.xlu0 %562, %v553
        %v564 = vpop.permute.xlu0 %563
        %567 = vset.pattern.permute.xlu0 0
        %568 = vperm.xlu0 %567, %v554
        %v569 = vpop.permute.xlu0 %568
        %572 = vset.pattern.permute.xlu0 0
        %573 = vperm.xlu0 %572, %v555
        %v574 = vpop.permute.xlu0 %573
        %v580 = vunpack.c.l.b16 %v548
        %v581 = vunpack.c.l.b16 %v549
        %v582 = vunpack.c.l.b16 %v550
        %v583 = vunpack.c.l.b16 %v551
        %v584 = vpack.c.b16 %v581, %v580
        %v585 = vpack.c.b16 %v583, %v582
        %v590 = vunpack.c.l.b16 %v544
        %v591 = vunpack.c.h.b16 %v544
        %v592 = vunpack.c.l.b16 %v545
        %v593 = vunpack.c.h.b16 %v545
        %v594 = vunpack.c.l.b16 %v546
        %v595 = vunpack.c.h.b16 %v546
        %v596 = vunpack.c.l.b16 %v547
        %v597 = vunpack.c.h.b16 %v547
        %v598 = vpack.c.b16 %v592, %v590
        %v599 = vpack.c.b16 %v593, %v591
        %v600 = vpack.c.b16 %v596, %v594
        %v601 = vpack.c.b16 %v597, %v595
        %v607 = vsel %vm464, %v584, 0
        %v610 = vsel %vm464, %v585, 0
        %612 = vmatprep.subr.bf16.mxu0 %v599
        %613 = vmatpush1.bf16.msra.mxu0 %v598
        %614 = vmatprep.subr.bf16.mxu0 %v601
        %615 = vmatpush1.bf16.msra.mxu0 %v600
        %616 = vmatprep.subr.bf16.mxu0 0
        %617 = vmatpush1.bf16.msra.mxu0 0
        %618 = vmatprep.subr.bf16.mxu0 0
        %619 = vmatpush1.bf16.msra.mxu0 0
        %620 = vmatprep.subr.bf16.mxu0 0
        %621 = vmatpush1.bf16.msra.mxu0 0
        %622 = vmatprep.subr.bf16.mxu0 0
        %623 = vmatpush1.bf16.msra.mxu0 0
        %624 = vmatprep.subr.bf16.mxu0 0
        %625 = vmatpush1.bf16.msra.mxu0 0
        %626 = vmatprep.subr.bf16.mxu0 0
        %627 = vmatpush1.bf16.msra.mxu0 0
        %628 = vmatprep.subr.bf16.mxu0 0
        %629 = vmatpush1.bf16.msra.mxu0 0
        %630 = vmatprep.subr.bf16.mxu0 0
        %631 = vmatpush1.bf16.msra.mxu0 0
        %632 = vmatprep.subr.bf16.mxu0 0
        %633 = vmatpush1.bf16.msra.mxu0 0
        %634 = vmatprep.subr.bf16.mxu0 0
        %635 = vmatpush1.bf16.msra.mxu0 0
        %636 = vmatprep.subr.bf16.mxu0 0
        %637 = vmatpush1.bf16.msra.mxu0 0
        %638 = vmatprep.subr.bf16.mxu0 0
        %639 = vmatpush1.bf16.msra.mxu0 0
        %640 = vmatprep.subr.bf16.mxu0 0
        %641 = vmatpush1.bf16.msra.mxu0 0
        %642 = vmatprep.subr.bf16.mxu0 0
        %643 = vmatpush1.bf16.msra.mxu0 0
        %644 = vmatprep.mubr.bf16.mxu0 0
        %645 = vmatmul.mubr.bf16.gmra.mrb[0].mxu0 %v607
        %v646 = vpop.f32.mrb[0].mxu0
        %v647 = vadd.f32 %v559, %v646
        %v648 = vpop.f32.mrb[0].mxu0
        %v649 = vadd.f32 %v559, %v648
        %v650 = vpop.f32.mrb[0].mxu0
        %v651 = vadd.f32 %v564, %v650
        %v652 = vpop.f32.mrb[0].mxu0
        %v653 = vadd.f32 %v564, %v652
        %654 = vmatprep.mubr.bf16.mxu0 0
        %655 = vmatmul.mubr.bf16.gmra.mrb[0].mxu0 %v610
        %v656 = vpop.f32.mrb[0].mxu0
        %v657 = vadd.f32 %v569, %v656
        %v658 = vpop.f32.mrb[0].mxu0
        %v659 = vadd.f32 %v569, %v658
        %v660 = vpop.f32.mrb[0].mxu0
        %v661 = vadd.f32 %v574, %v660
        %v662 = vpop.f32.mrb[0].mxu0
        %v663 = vadd.f32 %v574, %v662
        %664 = vdwg.mxu0
        %v665 = vmax.f32 %v647, 0.0
        %v666 = vmax.f32 %v649, 0.0
        %v667 = vmax.f32 %v651, 0.0
        %v668 = vmax.f32 %v653, 0.0
        %v669 = vmax.f32 %v657, 0.0
        %v670 = vmax.f32 %v659, 0.0
        %v671 = vmax.f32 %v661, 0.0
        %v672 = vmax.f32 %v663, 0.0
        %v673 = vpack.c.bf16 %v667, %v665
        %v674 = vpack.c.bf16 %v668, %v666
        %v675 = vpack.c.bf16 %v671, %v669
        %v676 = vpack.c.bf16 %v672, %v670
        %v685 = vunpack.c.l.b16 %v536
        %v686 = vunpack.c.l.b16 %v537
        %v687 = vunpack.c.l.b16 %v538
        %v688 = vunpack.c.l.b16 %v539
        %v689 = vunpack.c.l.b16 %v540
        %v690 = vunpack.c.l.b16 %v541
        %v691 = vunpack.c.l.b16 %v542
        %v692 = vunpack.c.l.b16 %v543
        %v693 = vpack.c.b16 %v686, %v685
        %v694 = vpack.c.b16 %v688, %v687
        %v695 = vpack.c.b16 %v690, %v689
        %v696 = vpack.c.b16 %v692, %v691
        %697 = vrot.lane.b32.xlu0 %v693, 96
        %v698 = vpop.permute.xlu0 %697
        %699 = vrot.lane.b32.xlu0 %v694, 96
        %v700 = vpop.permute.xlu0 %699
        %701 = vrot.lane.b32.xlu0 %v695, 96
        %v702 = vpop.permute.xlu0 %701
        %703 = vrot.lane.b32.xlu0 %v696, 96
        %v704 = vpop.permute.xlu0 %703
        %v706 = vsel %vm464, %v698, 0
        %v709 = vsel %vm464, %v700, 0
        %v712 = vsel %vm464, %v702, 0
        %v715 = vsel %vm464, %v704, 0
        %717 = vmatprep.subr.bf16.mxu0 %v674
        %718 = vmatpush1.bf16.msra.mxu0 %v673
        %719 = vmatprep.subr.bf16.mxu0 %v676
        %720 = vmatpush1.bf16.msra.mxu0 %v675
        %721 = vmatprep.subr.bf16.mxu0 0
        %722 = vmatpush1.bf16.msra.mxu0 0
        %723 = vmatprep.subr.bf16.mxu0 0
        %724 = vmatpush1.bf16.msra.mxu0 0
        %725 = vmatprep.subr.bf16.mxu0 0
        %726 = vmatpush1.bf16.msra.mxu0 0
        %727 = vmatprep.subr.bf16.mxu0 0
        %728 = vmatpush1.bf16.msra.mxu0 0
        %729 = vmatprep.subr.bf16.mxu0 0
        %730 = vmatpush1.bf16.msra.mxu0 0
        %731 = vmatprep.subr.bf16.mxu0 0
        %732 = vmatpush1.bf16.msra.mxu0 0
        %733 = vmatprep.subr.bf16.mxu0 0
        %734 = vmatpush1.bf16.msra.mxu0 0
        %735 = vmatprep.subr.bf16.mxu0 0
        %736 = vmatpush1.bf16.msra.mxu0 0
        %737 = vmatprep.subr.bf16.mxu0 0
        %738 = vmatpush1.bf16.msra.mxu0 0
        %739 = vmatprep.subr.bf16.mxu0 0
        %740 = vmatpush1.bf16.msra.mxu0 0
        %741 = vmatprep.subr.bf16.mxu0 0
        %742 = vmatpush1.bf16.msra.mxu0 0
        %743 = vmatprep.subr.bf16.mxu0 0
        %744 = vmatpush1.bf16.msra.mxu0 0
        %745 = vmatprep.subr.bf16.mxu0 0
        %746 = vmatpush1.bf16.msra.mxu0 0
        %747 = vmatprep.subr.bf16.mxu0 0
        %748 = vmatpush1.bf16.msra.mxu0 0
        %749 = vmatprep.mubr.bf16.mxu0 0
        %750 = vmatmul.mubr.bf16.gmra.mrb[0].mxu0 %v706
        %v751 = vpop.f32.mrb[0].mxu0
        %v752 = vadd.f32 0.0, %v751
        %v753 = vpop.f32.mrb[0].mxu0
        %v754 = vadd.f32 0.0, %v753
        %v755 = vpop.f32.mrb[0].mxu0
        %v756 = vadd.f32 0.0, %v755
        %v757 = vpop.f32.mrb[0].mxu0
        %v758 = vadd.f32 0.0, %v757
        %759 = vmatprep.mubr.bf16.mxu0 0
        %760 = vmatmul.mubr.bf16.gmra.mrb[0].mxu0 %v709
        %v761 = vpop.f32.mrb[0].mxu0
        %v762 = vadd.f32 0.0, %v761
        %v763 = vpop.f32.mrb[0].mxu0
        %v764 = vadd.f32 0.0, %v763
        %v765 = vpop.f32.mrb[0].mxu0
        %v766 = vadd.f32 0.0, %v765
        %v767 = vpop.f32.mrb[0].mxu0
        %v768 = vadd.f32 0.0, %v767
        %769 = vmatprep.mubr.bf16.mxu0 0
        %770 = vmatmul.mubr.bf16.gmra.mrb[0].mxu0 %v712
        %v771 = vpop.f32.mrb[0].mxu0
        %v772 = vadd.f32 0.0, %v771
        %v773 = vpop.f32.mrb[0].mxu0
        %v774 = vadd.f32 0.0, %v773
        %v775 = vpop.f32.mrb[0].mxu0
        %v776 = vadd.f32 0.0, %v775
        %v777 = vpop.f32.mrb[0].mxu0
        %v778 = vadd.f32 0.0, %v777
        %779 = vmatprep.mubr.bf16.mxu0 0
        %780 = vmatmul.mubr.bf16.gmra.mrb[0].mxu0 %v715
        %v781 = vpop.f32.mrb[0].mxu0
        %v782 = vadd.f32 0.0, %v781
        %v783 = vpop.f32.mrb[0].mxu0
        %v784 = vadd.f32 0.0, %v783
        %v785 = vpop.f32.mrb[0].mxu0
        %v786 = vadd.f32 0.0, %v785
        %v787 = vpop.f32.mrb[0].mxu0
        %v788 = vadd.f32 0.0, %v787
        %789 = vdwg.mxu0
        %v791 = vsel %vm464, %v693, 0
        %v794 = vsel %vm464, %v694, 0
        %v797 = vsel %vm464, %v695, 0
        %v800 = vsel %vm464, %v696, 0
        %802 = vmatprep.subr.bf16.mxu0 %v533
        %803 = vmatpush1.bf16.msra.mxu0 %v532
        %804 = vmatprep.subr.bf16.mxu0 %v535
        %805 = vmatpush1.bf16.msra.mxu0 %v534
        %806 = vmatprep.subr.bf16.mxu0 0
        %807 = vmatpush1.bf16.msra.mxu0 0
        %808 = vmatprep.subr.bf16.mxu0 0
        %809 = vmatpush1.bf16.msra.mxu0 0
        %810 = vmatprep.subr.bf16.mxu0 0
        %811 = vmatpush1.bf16.msra.mxu0 0
        %812 = vmatprep.subr.bf16.mxu0 0
        %813 = vmatpush1.bf16.msra.mxu0 0
        %814 = vmatprep.subr.bf16.mxu0 0
        %815 = vmatpush1.bf16.msra.mxu0 0
        %816 = vmatprep.subr.bf16.mxu0 0
        %817 = vmatpush1.bf16.msra.mxu0 0
        %818 = vmatprep.subr.bf16.mxu0 0
        %819 = vmatpush1.bf16.msra.mxu0 0
        %820 = vmatprep.subr.bf16.mxu0 0
        %821 = vmatpush1.bf16.msra.mxu0 0
        %822 = vmatprep.subr.bf16.mxu0 0
        %823 = vmatpush1.bf16.msra.mxu0 0
        %824 = vmatprep.subr.bf16.mxu0 0
        %825 = vmatpush1.bf16.msra.mxu0 0
        %826 = vmatprep.subr.bf16.mxu0 0
        %827 = vmatpush1.bf16.msra.mxu0 0
        %828 = vmatprep.subr.bf16.mxu0 0
        %829 = vmatpush1.bf16.msra.mxu0 0
        %830 = vmatprep.subr.bf16.mxu0 0
        %831 = vmatpush1.bf16.msra.mxu0 0
        %832 = vmatprep.subr.bf16.mxu0 0
        %833 = vmatpush1.bf16.msra.mxu0 0
        %834 = vmatprep.mubr.bf16.mxu0 0
        %835 = vmatmul.mubr.bf16.gmra.mrb[0].mxu0 %v791
        %v836 = vpop.f32.mrb[0].mxu0
        %v837 = vadd.f32 %v752, %v836
        %v838 = vpop.f32.mrb[0].mxu0
        %v839 = vadd.f32 %v754, %v838
        %v840 = vpop.f32.mrb[0].mxu0
        %v841 = vadd.f32 %v756, %v840
        %v842 = vpop.f32.mrb[0].mxu0
        %v843 = vadd.f32 %v758, %v842
        %844 = vmatprep.mubr.bf16.mxu0 0
        %845 = vmatmul.mubr.bf16.gmra.mrb[0].mxu0 %v794
        %v846 = vpop.f32.mrb[0].mxu0
        %v847 = vadd.f32 %v762, %v846
        %v848 = vpop.f32.mrb[0].mxu0
        %v849 = vadd.f32 %v764, %v848
        %v850 = vpop.f32.mrb[0].mxu0
        %v851 = vadd.f32 %v766, %v850
        %v852 = vpop.f32.mrb[0].mxu0
        %v853 = vadd.f32 %v768, %v852
        %854 = vmatprep.mubr.bf16.mxu0 0
        %855 = vmatmul.mubr.bf16.gmra.mrb[0].mxu0 %v797
        %v856 = vpop.f32.mrb[0].mxu0
        %v857 = vadd.f32 %v772, %v856
        %v858 = vpop.f32.mrb[0].mxu0
        %v859 = vadd.f32 %v774, %v858
        %v860 = vpop.f32.mrb[0].mxu0
        %v861 = vadd.f32 %v776, %v860
        %v862 = vpop.f32.mrb[0].mxu0
        %v863 = vadd.f32 %v778, %v862
        %864 = vmatprep.mubr.bf16.mxu0 0
        %865 = vmatmul.mubr.bf16.gmra.mrb[0].mxu0 %v800
        %v866 = vpop.f32.mrb[0].mxu0
        %v867 = vadd.f32 %v782, %v866
        %v868 = vpop.f32.mrb[0].mxu0
        %v869 = vadd.f32 %v784, %v868
        %v870 = vpop.f32.mrb[0].mxu0
        %v871 = vadd.f32 %v786, %v870
        %v872 = vpop.f32.mrb[0].mxu0
        %v873 = vadd.f32 %v788, %v872
        %874 = vdwg.mxu0
        %v875 = vld [vmem:[%s7] sm:$0xff]
        %v876 = vld [vmem:[%s7 + $0x8] sm:$0xff]
        %v877 = vld [vmem:[%s7 + $0x10] sm:$0xff]
        %v878 = vld [vmem:[%s7 + $0x18] sm:$0xff]
        %v879 = vld [vmem:[%s7 + $0x20] sm:$0xff]
        %v880 = vld [vmem:[%s7 + $0x28] sm:$0xff]
        %v881 = vld [vmem:[%s7 + $0x30] sm:$0xff]
        %v882 = vld [vmem:[%s7 + $0x38] sm:$0xff]
        %884 = vset.pattern.permute.xlu0 0
        %885 = vperm.xlu0 %884, %v875
        %v886 = vpop.permute.xlu0 %885
        %889 = vset.pattern.permute.xlu0 0
        %890 = vperm.xlu0 %889, %v876
        %v891 = vpop.permute.xlu0 %890
        %894 = vset.pattern.permute.xlu0 0
        %895 = vperm.xlu0 %894, %v877
        %v896 = vpop.permute.xlu0 %895
        %899 = vset.pattern.permute.xlu0 0
        %900 = vperm.xlu0 %899, %v878
        %v901 = vpop.permute.xlu0 %900
        %904 = vset.pattern.permute.xlu0 0
        %905 = vperm.xlu0 %904, %v879
        %v906 = vpop.permute.xlu0 %905
        %909 = vset.pattern.permute.xlu0 0
        %910 = vperm.xlu0 %909, %v880
        %v911 = vpop.permute.xlu0 %910
        %914 = vset.pattern.permute.xlu0 0
        %915 = vperm.xlu0 %914, %v881
        %v916 = vpop.permute.xlu0 %915
        %919 = vset.pattern.permute.xlu0 0
        %920 = vperm.xlu0 %919, %v882
        %v921 = vpop.permute.xlu0 %920
        %v923 = vadd.f32 %v837, %v886
        %v924 = vadd.f32 %v839, %v886
        %v925 = vadd.f32 %v841, %v891
        %v926 = vadd.f32 %v843, %v891
        %v927 = vadd.f32 %v847, %v896
        %v928 = vadd.f32 %v849, %v896
        %v929 = vadd.f32 %v851, %v901
        %v930 = vadd.f32 %v853, %v901
        %v931 = vadd.f32 %v857, %v906
        %v932 = vadd.f32 %v859, %v906
        %v933 = vadd.f32 %v861, %v911
        %v934 = vadd.f32 %v863, %v911
        %v935 = vadd.f32 %v867, %v916
        %v936 = vadd.f32 %v869, %v916
        %v937 = vadd.f32 %v871, %v921
        %v938 = vadd.f32 %v873, %v921
        %v939 = vmax.f32 %v923, 0.0
        %v940 = vmax.f32 %v924, 0.0
        %v941 = vmax.f32 %v925, 0.0
        %v942 = vmax.f32 %v926, 0.0
        %v943 = vmax.f32 %v927, 0.0
        %v944 = vmax.f32 %v928, 0.0
        %v945 = vmax.f32 %v929, 0.0
        %v946 = vmax.f32 %v930, 0.0
        %v947 = vmax.f32 %v931, 0.0
        %v948 = vmax.f32 %v932, 0.0
        %v949 = vmax.f32 %v933, 0.0
        %v950 = vmax.f32 %v934, 0.0
        %v951 = vmax.f32 %v935, 0.0
        %v952 = vmax.f32 %v936, 0.0
        %v953 = vmax.f32 %v937, 0.0
        %v954 = vmax.f32 %v938, 0.0
        %v955 = vpack.c.bf16 %v941, %v939
        %v956 = vpack.c.bf16 %v942, %v940
        %v957 = vpack.c.bf16 %v945, %v943
        %v958 = vpack.c.bf16 %v946, %v944
        %v959 = vpack.c.bf16 %v949, %v947
        %v960 = vpack.c.bf16 %v950, %v948
        %v961 = vpack.c.bf16 %v953, %v951
        %v962 = vpack.c.bf16 %v954, %v952
        %v971 = vunpack.c.l.b16 %v955
        %v972 = vunpack.c.l.b16 %v956
        %v973 = vunpack.c.h.b16 %v955
        %v974 = vunpack.c.h.b16 %v956
        %v975 = vunpack.c.l.b16 %v957
        %v976 = vunpack.c.l.b16 %v958
        %v977 = vunpack.c.h.b16 %v957
        %v978 = vunpack.c.h.b16 %v958
        %v979 = vunpack.c.l.b16 %v959
        %v980 = vunpack.c.l.b16 %v960
        %v981 = vunpack.c.h.b16 %v959
        %v982 = vunpack.c.h.b16 %v960
        %v983 = vunpack.c.l.b16 %v961
        %v984 = vunpack.c.l.b16 %v962
        %v985 = vunpack.c.h.b16 %v961
        %v986 = vunpack.c.h.b16 %v962
        %v987 = vpack.c.b16 %v972, %v971
        %v988 = vpack.c.b16 %v974, %v973
        %v989 = vpack.c.b16 %v976, %v975
        %v990 = vpack.c.b16 %v978, %v977
        %v991 = vpack.c.b16 %v980, %v979
        %v992 = vpack.c.b16 %v982, %v981
        %v993 = vpack.c.b16 %v984, %v983
        %v994 = vpack.c.b16 %v986, %v985
        %1003 = vst [vmem:[%s379] sm:$0xff] %v987
        %1004 = vst [vmem:[%s379 + $0x8] sm:$0xff] %v988
        %1005 = vst [vmem:[%s379 + $0x10] sm:$0xff] %v989
        %1006 = vst [vmem:[%s379 + $0x18] sm:$0xff] %v990
        %1007 = vst [vmem:[%s379 + $0x20] sm:$0xff] %v991
        %1008 = vst [vmem:[%s379 + $0x28] sm:$0xff] %v992
        %1009 = vst [vmem:[%s379 + $0x30] sm:$0xff] %v993
        %1010 = vst [vmem:[%s379 + $0x38] sm:$0xff] %v994
        %s1011 = sand.u32 %s228, 1
        %s1012 = scalar_lea.sflag [#allocation4], %s1011
        %s1013 = sand.u32 %s228, 1
        %s1014 = smul.addr %s1013, 64
        %s1015 = scalar_lea.vmem [#allocation7], %s1014
        // Predicated region
        $region61: #{tpu_custom_call.1} parent=51 // pred_check
          %p1016 = pneg %p238
        $region62: #{tpu_custom_call.1} parent=51 // pred_check_branch
          %1018 = sbr.rel (%p1016) target = $region64
        $region63: #{tpu_custom_call.1} parent=51 // pred_region
          %s1019 = smul.u32 2, %s29
          %s1021 = ssub.s32 1024, 1024
          %1022 = vsyncadd %s1012, %s1021
          %s1023 = smul.addr %s28, 16
          %s1024 = sadd.s32 %s1019, %s1023
          %s1025 = smul.addr %s1024, 64
          %s1026 = scalar_lea.hbm %s8, %s1025
          %s1027 = sshll.u32 %s1015, 4
          %s1028 = int_to_ptr.vmem [resolvable:$true] %s1027
          %1033 = dma.vmem_to_hbm [thread:$0]  %s1028, 1024, %s1026, %s1012, 128, 128, 8
        $region64: #{tpu_custom_call.1} parent=51 // pred_fallthru
          _
      $region52: #{tpu_custom_call.1} parent=5 // pred_fallthru
        _
      %p1034 = scmp.le.s32.totalorder 2, %s19
      // Predicated region
      $region65: #{tpu_custom_call.1} parent=5 // pred_check
        %p1035 = pneg %p1034
      $region66: #{tpu_custom_call.1} parent=5 // pred_check_branch
        %1037 = sbr.rel (%p1035) target = $region68
      $region67: #{tpu_custom_call.1} parent=5 // pred_region
        %s1038 = ssub.s32 %s19, 2
        // Predicated region
        $region69: #{tpu_custom_call.1} parent=67 // pred_check
          %p1039 = pneg %p244
        $region70: #{tpu_custom_call.1} parent=67 // pred_check_branch
          %1041 = sbr.rel (%p1039) target = $region72
        $region71: #{tpu_custom_call.1} parent=67 // pred_region
          %s1042 = sand.u32 %s229, 1
          %s1043 = scalar_lea.sflag [#allocation4], %s1042
          %s1044 = sand.u32 %s229, 1
          %s1045 = smul.addr %s1044, 64
          %s1046 = scalar_lea.vmem [#allocation7], %s1045
          %1047 = dma.done %s1043, 1024
        $region72: #{tpu_custom_call.1} parent=67 // pred_fallthru
          _
      $region68: #{tpu_custom_call.1} parent=5 // pred_fallthru
        _
    $region6: #{tpu_custom_call.1} parent=1 // loop_footer
      %s23 = sadd.s32 1, %s19
    $region7: #{tpu_custom_call.1} parent=1 // loop_footer_branch
      %18 = sbr.rel target = $region3
    $region8: #{tpu_custom_call.1} parent=1 // loop_exit
      _
    %1048 = vsyncpa [#allocation3], 1
    %s1049 = scalar_lea.sflag [#allocation3], 1
    %1050 = vsyncpa %s1049, 1
    %1051 = vsyncpa [#allocation6], 1
    %1052 = vsyncpa [#allocation4], 1
    %s1053 = scalar_lea.sflag [#allocation4], 1
    %1054 = vsyncpa %s1053, 1

// kernel: tpu_custom_call.1
$region0: #{tpu_custom_call.1}
  #allocation0 [shape = 'u32[]', space=smem, size = 0x4, offset = 0x4, fixed_abs, tag = 'smem constant byte address 0x4 - core index']
  #allocation1 [shape = 'u32[144,128]{1,0:T(1,128)}', space=vmem, size = 0x12000, scoped, tag = 'internal scratch']
  %s0 = inlined_call_operand.vmem [shape: bf16[2,32,256], index: 0, kind: input, shape index: {}]
  %s1 = inlined_call_operand.vmem [shape: bf16[2,32,256], index: 1, kind: input, shape index: {}]
  %s2 = inlined_call_operand.hbm [shape: bf16[1,32,32], index: 2, kind: input, shape index: {}]
  %s3 = inlined_call_operand.vmem [shape: f32[32,1], index: 3, kind: input, shape index: {}]
  %s4 = inlined_call_operand.vmem [shape: bf16[1,32,32], index: 4, kind: input, shape index: {}]
  %s5 = inlined_call_operand.vmem [shape: f32[32,1], index: 5, kind: input, shape index: {}]
  %s6 = inlined_call_operand.hbm [shape: bf16[64,64], index: 6, kind: input, shape index: {}]
  %s7 = inlined_call_operand.vmem [shape: f32[64,1], index: 7, kind: input, shape index: {}]
  %s8 = inlined_call_operand.hbm [shape: bf16[2,64,256], index: 8, kind: output, shape index: {}]
  %s9 = sld [smem:[#allocation0]]
  $region73: #{tpu_custom_call.1} parent=0
    _
  %s11 = ssub.s32 1, %s9
  %s12 = scalar_select 0, %s11, %s9
  $region1: #{tpu_custom_call.1} parent=0
    #allocation2 [shape = 'u8[8192]{0}', space=vmem, size = 0x2000, scoped, tag = 'input window, operand 2, single buffered']
    #allocation3 [shape = 's32[2]{0}', space=sflag, size = 0x8, scoped, tag = 'scoped memory for tpu_custom_call.1']
    #allocation4 [shape = 's32[2]{0}', space=sflag, size = 0x8, scoped, tag = 'scoped memory for tpu_custom_call.1']
    #allocation5 [shape = 'u8[16384]{0}', space=vmem, size = 0x4000, scoped, tag = 'input window, operand 6, single buffered']
    #allocation6 [shape = 's32[1]{0}', space=sflag, size = 0x4, scoped, tag = 'scoped memory for tpu_custom_call.1']
    #allocation7 [shape = 'u8[65536]{0}', space=vmem, size = 0x10000, scoped, tag = 'output window, operand 0']
    %13 = vsyncpa [#allocation3], 0
    %14 = vsyncpa [#allocation6], 0
    %15 = vsyncpa [#allocation4], 0
    %s16 = scalar_lea.sflag [#allocation4], 1
    %17 = vsyncpa %s16, 0
    loop: start=0, step=1, limit=4
    $region2: #{tpu_custom_call.1} parent=1 // loop_pre_header
      _
    $region3: #{tpu_custom_call.1} parent=1 // loop_header
      %s19 = sphi 0, %s23
      %p20 = scmp.ge.s32.totalorder %s19, 4
      %s26 = sphi 0, %s38
      %s27 = sphi 0, %s34
      %s28 = sphi 0, %s26
      %s29 = sphi 0, %s27
      %s30 = sphi 0, %s28
      %s31 = sphi 0, %s29
      %s43 = sphi 0, %s45
      %s46 = sphi 0, %s43
      %s47 = sphi 0, %s46
      %s63 = sphi 0, %s47
      %s71 = sphi 0, %s73
      %s74 = sphi 0, %s71
      %s75 = sphi 0, %s74
      %s91 = sphi 0, %s75
      %s95 = sphi 0, %s95
      %s97 = sphi 0, %s95
      %s98 = sphi 0, %s97
      %s112 = sphi 0, %s98
      %s116 = sphi 0, %s116
      %s118 = sphi 0, %s116
      %s119 = sphi 0, %s118
      %s133 = sphi 0, %s119
      %s137 = sphi 0, %s137
      %s139 = sphi 0, %s137
      %s140 = sphi 0, %s139
      %s154 = sphi 0, %s140
      %s158 = sphi 0, %s158
      %s160 = sphi 0, %s158
      %s161 = sphi 0, %s160
      %s175 = sphi 0, %s161
      %s179 = sphi 0, %s179
      %s181 = sphi 0, %s179
      %s182 = sphi 0, %s181
      %s196 = sphi 0, %s182
      %s200 = sphi 0, %s200
      %s202 = sphi 0, %s200
      %s203 = sphi 0, %s202
      %s217 = sphi 0, %s203
      %s225 = sphi 0, %s227
      %s228 = sphi 0, %s225
      %s229 = sphi 0, %s228
      %s245 = sphi 0, %s229
    $region4: #{tpu_custom_call.1} parent=1 // loop_header_branch
      %22 = sbr.rel (%p20) target = $region8
    $region5: #{tpu_custom_call.1} parent=1 // loop_body
      %s24 = ssub.s32 %s19, 1
      %s25 = ssub.s32 %s19, 2
      %s32 = sadd.s32 1, %s27
      %p33 = scmp.ge.s32.totalorder %s32, 1
      %s34 = scalar_select %p33, 0, %s32
      %s35 = sadd.s32 1, %s26
      %s36 = scalar_select %p33, %s35, %s26
      %p37 = scmp.ge.s32.totalorder %s36, 2
      %s38 = scalar_select %p37, 0, %s36
      %s39 = ssub.s32 %s26, %s38
      %s40 = ssub.s32 %s27, %s34
      %s41 = sor.u32 %s39, %s40
      %p42 = scmp.eq.s32.totalorder %s41, 0
      %s44 = sadd.s32 %s43, 1
      %s45 = scalar_select %p42, %s43, %s44
      %p48 = pneg %p42
      %p49 = scmp.eq.s32.totalorder %s19, 1
      %p50 = por %p48, %p49
      %p51 = scmp.ne.s32.totalorder %s43, %s46
      %p52 = scmp.eq.s32.totalorder %s19, 0
      %p53 = por %p51, %p52
      %p54 = scmp.ne.s32.totalorder %s43, %s46
      %p55 = scmp.eq.s32.totalorder %s24, 1
      %p56 = por %p54, %p55
      %p57 = scmp.ne.s32.totalorder %s46, %s47
      %p58 = scmp.eq.s32.totalorder %s24, 0
      %p59 = por %p57, %p58
      %p60 = scmp.ne.s32.totalorder %s46, %s47
      %p61 = scmp.eq.s32.totalorder %s25, 1
      %p62 = por %p60, %p61
      %p64 = scmp.ne.s32.totalorder %s47, %s63
      %p65 = scmp.eq.s32.totalorder %s25, 0
      %p66 = por %p64, %p65
      %s67 = ssub.s32 %s26, %s38
      %s68 = ssub.s32 %s27, %s34
      %s69 = sor.u32 %s67, %s68
      %p70 = scmp.eq.s32.totalorder %s69, 0
      %s72 = sadd.s32 %s71, 1
      %s73 = scalar_select %p70, %s71, %s72
      %p76 = pneg %p70
      %p77 = scmp.eq.s32.totalorder %s19, 1
      %p78 = por %p76, %p77
      %p79 = scmp.ne.s32.totalorder %s71, %s74
      %p80 = scmp.eq.s32.totalorder %s19, 0
      %p81 = por %p79, %p80
      %p82 = scmp.ne.s32.totalorder %s71, %s74
      %p83 = scmp.eq.s32.totalorder %s24, 1
      %p84 = por %p82, %p83
      %p85 = scmp.ne.s32.totalorder %s74, %s75
      %p86 = scmp.eq.s32.totalorder %s24, 0
      %p87 = por %p85, %p86
      %p88 = scmp.ne.s32.totalorder %s74, %s75
      %p89 = scmp.eq.s32.totalorder %s25, 1
      %p90 = por %p88, %p89
      %p92 = scmp.ne.s32.totalorder %s75, %s91
      %p93 = scmp.eq.s32.totalorder %s25, 0
      %p94 = por %p92, %p93
      %s96 = sadd.s32 %s95, 1
      %p99 = scmp.eq.s32.totalorder %s19, 1
      %p100 = scmp.ne.s32.totalorder %s95, %s97
      %p101 = scmp.eq.s32.totalorder %s19, 0
      %p102 = por %p100, %p101
      %p103 = scmp.ne.s32.totalorder %s95, %s97
      %p104 = scmp.eq.s32.totalorder %s24, 1
      %p105 = por %p103, %p104
      %p106 = scmp.ne.s32.totalorder %s97, %s98
      %p107 = scmp.eq.s32.totalorder %s24, 0
      %p108 = por %p106, %p107
      %p109 = scmp.ne.s32.totalorder %s97, %s98
      %p110 = scmp.eq.s32.totalorder %s25, 1
      %p111 = por %p109, %p110
      %p113 = scmp.ne.s32.totalorder %s98, %s112
      %p114 = scmp.eq.s32.totalorder %s25, 0
      %p115 = por %p113, %p114
      %s117 = sadd.s32 %s116, 1
      %p120 = scmp.eq.s32.totalorder %s19, 1
      %p121 = scmp.ne.s32.totalorder %s116, %s118
      %p122 = scmp.eq.s32.totalorder %s19, 0
      %p123 = por %p121, %p122
      %p124 = scmp.ne.s32.totalorder %s116, %s118
      %p125 = scmp.eq.s32.totalorder %s24, 1
      %p126 = por %p124, %p125
      %p127 = scmp.ne.s32.totalorder %s118, %s119
      %p128 = scmp.eq.s32.totalorder %s24, 0
      %p129 = por %p127, %p128
      %p130 = scmp.ne.s32.totalorder %s118, %s119
      %p131 = scmp.eq.s32.totalorder %s25, 1
      %p132 = por %p130, %p131
      %p134 = scmp.ne.s32.totalorder %s119, %s133
      %p135 = scmp.eq.s32.totalorder %s25, 0
      %p136 = por %p134, %p135
      %s138 = sadd.s32 %s137, 1
      %p141 = scmp.eq.s32.totalorder %s19, 1
      %p142 = scmp.ne.s32.totalorder %s137, %s139
      %p143 = scmp.eq.s32.totalorder %s19, 0
      %p144 = por %p142, %p143
      %p145 = scmp.ne.s32.totalorder %s137, %s139
      %p146 = scmp.eq.s32.totalorder %s24, 1
      %p147 = por %p145, %p146
      %p148 = scmp.ne.s32.totalorder %s139, %s140
      %p149 = scmp.eq.s32.totalorder %s24, 0
      %p150 = por %p148, %p149
      %p151 = scmp.ne.s32.totalorder %s139, %s140
      %p152 = scmp.eq.s32.totalorder %s25, 1
      %p153 = por %p151, %p152
      %p155 = scmp.ne.s32.totalorder %s140, %s154
      %p156 = scmp.eq.s32.totalorder %s25, 0
      %p157 = por %p155, %p156
      %s159 = sadd.s32 %s158, 1
      %p162 = scmp.eq.s32.totalorder %s19, 1
      %p163 = scmp.ne.s32.totalorder %s158, %s160
      %p164 = scmp.eq.s32.totalorder %s19, 0
      %p165 = por %p163, %p164
      %p166 = scmp.ne.s32.totalorder %s158, %s160
      %p167 = scmp.eq.s32.totalorder %s24, 1
      %p168 = por %p166, %p167
      %p169 = scmp.ne.s32.totalorder %s160, %s161
      %p170 = scmp.eq.s32.totalorder %s24, 0
      %p171 = por %p169, %p170
      %p172 = scmp.ne.s32.totalorder %s160, %s161
      %p173 = scmp.eq.s32.totalorder %s25, 1
      %p174 = por %p172, %p173
      %p176 = scmp.ne.s32.totalorder %s161, %s175
      %p177 = scmp.eq.s32.totalorder %s25, 0
      %p178 = por %p176, %p177
      %s180 = sadd.s32 %s179, 1
      %p183 = scmp.eq.s32.totalorder %s19, 1
      %p184 = scmp.ne.s32.totalorder %s179, %s181
      %p185 = scmp.eq.s32.totalorder %s19, 0
      %p186 = por %p184, %p185
      %p187 = scmp.ne.s32.totalorder %s179, %s181
      %p188 = scmp.eq.s32.totalorder %s24, 1
      %p189 = por %p187, %p188
      %p190 = scmp.ne.s32.totalorder %s181, %s182
      %p191 = scmp.eq.s32.totalorder %s24, 0
      %p192 = por %p190, %p191
      %p193 = scmp.ne.s32.totalorder %s181, %s182
      %p194 = scmp.eq.s32.totalorder %s25, 1
      %p195 = por %p193, %p194
      %p197 = scmp.ne.s32.totalorder %s182, %s196
      %p198 = scmp.eq.s32.totalorder %s25, 0
      %p199 = por %p197, %p198
      %s201 = sadd.s32 %s200, 1
      %p204 = scmp.eq.s32.totalorder %s19, 1
      %p205 = scmp.ne.s32.totalorder %s200, %s202
      %p206 = scmp.eq.s32.totalorder %s19, 0
      %p207 = por %p205, %p206
      %p208 = scmp.ne.s32.totalorder %s200, %s202
      %p209 = scmp.eq.s32.totalorder %s24, 1
      %p210 = por %p208, %p209
      %p211 = scmp.ne.s32.totalorder %s202, %s203
      %p212 = scmp.eq.s32.totalorder %s24, 0
      %p213 = por %p211, %p212
      %p214 = scmp.ne.s32.totalorder %s202, %s203
      %p215 = scmp.eq.s32.totalorder %s25, 1
      %p216 = por %p214, %p215
      %p218 = scmp.ne.s32.totalorder %s203, %s217
      %p219 = scmp.eq.s32.totalorder %s25, 0
      %p220 = por %p218, %p219
      %s221 = ssub.s32 %s26, %s38
      %s222 = ssub.s32 %s27, %s34
      %s223 = sor.u32 %s221, %s222
      %p224 = scmp.eq.s32.totalorder %s223, 0
      %s226 = sadd.s32 %s225, 1
      %s227 = scalar_select %p224, %s225, %s226
      %p230 = pneg %p224
      %p231 = scmp.eq.s32.totalorder %s19, 1
      %p232 = por %p230, %p231
      %p233 = scmp.ne.s32.totalorder %s225, %s228
      %p234 = scmp.eq.s32.totalorder %s19, 0
      %p235 = por %p233, %p234
      %p236 = scmp.ne.s32.totalorder %s225, %s228
      %p237 = scmp.eq.s32.totalorder %s24, 1
      %p238 = por %p236, %p237
      %p239 = scmp.ne.s32.totalorder %s228, %s229
      %p240 = scmp.eq.s32.totalorder %s24, 0
      %p241 = por %p239, %p240
      %p242 = scmp.ne.s32.totalorder %s228, %s229
      %p243 = scmp.eq.s32.totalorder %s25, 1
      %p244 = por %p242, %p243
      %p246 = scmp.ne.s32.totalorder %s229, %s245
      %p247 = scmp.eq.s32.totalorder %s25, 0
      %p248 = por %p246, %p247
      %p249 = scmp.le.s32.totalorder 1, %s19
      %p250 = scmp.lt.s32.totalorder %s19, 3
      %p251 = pnand %p249, %p250
      %p252 = pneg %p251
      // Predicated region
      $region9: #{tpu_custom_call.1} parent=5 // pred_check
        _
      $region10: #{tpu_custom_call.1} parent=5 // pred_check_branch
        %254 = sbr.rel (%p251) target = $region12
      $region11: #{tpu_custom_call.1} parent=5 // pred_region
        %s255 = ssub.s32 %s19, 1
        // Predicated region
        $region13: #{tpu_custom_call.1} parent=11 // pred_check
          %p256 = pneg %p108
        $region14: #{tpu_custom_call.1} parent=11 // pred_check_branch
          %258 = sbr.rel (%p256) target = $region16
        $region15: #{tpu_custom_call.1} parent=11 // pred_region
          %s260 = ssub.s32 256, 256
          %261 = vsyncadd [#allocation3], %s260
          %s262 = sshll.u32 [#allocation2], 4
          %s263 = int_to_ptr.vmem [resolvable:$true] %s262
          %268 = dma.hbm_to_vmem [thread:$0]  %s2, 256, %s263, [#allocation3], 64, 64, 4
        $region16: #{tpu_custom_call.1} parent=11 // pred_fallthru
          _
        // Predicated region
        $region17: #{tpu_custom_call.1} parent=11 // pred_check
          %p269 = pneg %p129
        $region18: #{tpu_custom_call.1} parent=11 // pred_check_branch
          %271 = sbr.rel (%p269) target = $region20
        $region19: #{tpu_custom_call.1} parent=11 // pred_region
          _
        $region20: #{tpu_custom_call.1} parent=11 // pred_fallthru
          _
        // Predicated region
        $region21: #{tpu_custom_call.1} parent=11 // pred_check
          %p272 = pneg %p150
        $region22: #{tpu_custom_call.1} parent=11 // pred_check_branch
          %274 = sbr.rel (%p272) target = $region24
        $region23: #{tpu_custom_call.1} parent=11 // pred_region
          _
        $region24: #{tpu_custom_call.1} parent=11 // pred_fallthru
          _
        // Predicated region
        $region25: #{tpu_custom_call.1} parent=11 // pred_check
          %p275 = pneg %p171
        $region26: #{tpu_custom_call.1} parent=11 // pred_check_branch
          %277 = sbr.rel (%p275) target = $region28
        $region27: #{tpu_custom_call.1} parent=11 // pred_region
          _
        $region28: #{tpu_custom_call.1} parent=11 // pred_fallthru
          _
        // Predicated region
        $region29: #{tpu_custom_call.1} parent=11 // pred_check
          %p278 = pneg %p192
        $region30: #{tpu_custom_call.1} parent=11 // pred_check_branch
          %280 = sbr.rel (%p278) target = $region32
        $region31: #{tpu_custom_call.1} parent=11 // pred_region
          %s282 = ssub.s32 512, 512
          %283 = vsyncadd [#allocation6], %s282
          %s284 = sshll.u32 [#allocation5], 4
          %s285 = int_to_ptr.vmem [resolvable:$true] %s284
          %290 = dma.hbm_to_vmem [thread:$0]  %s6, 512, %s285, [#allocation6], 64, 64, 4
        $region32: #{tpu_custom_call.1} parent=11 // pred_fallthru
          _
        // Predicated region
        $region33: #{tpu_custom_call.1} parent=11 // pred_check
          %p291 = pneg %p213
        $region34: #{tpu_custom_call.1} parent=11 // pred_check_branch
          %293 = sbr.rel (%p291) target = $region36
        $region35: #{tpu_custom_call.1} parent=11 // pred_region
          _
        $region36: #{tpu_custom_call.1} parent=11 // pred_fallthru
          _
      $region12: #{tpu_custom_call.1} parent=5 // pred_fallthru
        _
      %p294 = scmp.lt.s32.totalorder %s19, 2
      // Predicated region
      $region37: #{tpu_custom_call.1} parent=5 // pred_check
        %p295 = pneg %p294
      $region38: #{tpu_custom_call.1} parent=5 // pred_check_branch
        %297 = sbr.rel (%p295) target = $region40
      $region39: #{tpu_custom_call.1} parent=5 // pred_region
        // Predicated region
        $region41: #{tpu_custom_call.1} parent=39 // pred_check
          %p298 = pneg %p53
        $region42: #{tpu_custom_call.1} parent=39 // pred_check_branch
          %300 = sbr.rel (%p298) target = $region44
        $region43: #{tpu_custom_call.1} parent=39 // pred_region
          %s301 = smul.u32 2, %s27
          %p302 = scmp.lt.s32.totalorder %s26, 1
          %s303 = scalar_select %p302, %s26, 1
          %p304 = scmp.lt.s32.totalorder %s301, 1
          %s305 = scalar_select %p304, %s301, 1
          %s306 = smul.addr %s303, 8
          %s307 = sadd.s32 %s305, %s306
          %s308 = smul.addr %s307, 4
          %s309 = scalar_lea.vmem %s0, %s308
          %s310 = smul.u32 2, %s27
        $region44: #{tpu_custom_call.1} parent=39 // pred_fallthru
          _
        // Predicated region
        $region45: #{tpu_custom_call.1} parent=39 // pred_check
          %p311 = pneg %p81
        $region46: #{tpu_custom_call.1} parent=39 // pred_check_branch
          %313 = sbr.rel (%p311) target = $region48
        $region47: #{tpu_custom_call.1} parent=39 // pred_region
          %s314 = smul.u32 2, %s27
          %p315 = scmp.lt.s32.totalorder %s26, 1
          %s316 = scalar_select %p315, %s26, 1
          %p317 = scmp.lt.s32.totalorder %s314, 1
          %s318 = scalar_select %p317, %s314, 1
          %s319 = smul.addr %s316, 8
          %s320 = sadd.s32 %s318, %s319
          %s321 = smul.addr %s320, 4
          %s322 = scalar_lea.vmem %s1, %s321
          %s323 = smul.u32 2, %s27
        $region48: #{tpu_custom_call.1} parent=39 // pred_fallthru
          _
      $region40: #{tpu_custom_call.1} parent=5 // pred_fallthru
        _
      %p324 = scmp.le.s32.totalorder 1, %s19
      %p325 = scmp.lt.s32.totalorder %s19, 3
      %p326 = pnand %p324, %p325
      %p327 = pneg %p326
      // Predicated region
      $region49: #{tpu_custom_call.1} parent=5 // pred_check
        _
      $region50: #{tpu_custom_call.1} parent=5 // pred_check_branch
        %329 = sbr.rel (%p326) target = $region52
      $region51: #{tpu_custom_call.1} parent=5 // pred_region
        %s330 = ssub.s32 %s19, 1
        // Predicated region
        $region53: #{tpu_custom_call.1} parent=51 // pred_check
          %p331 = pneg %p108
        $region54: #{tpu_custom_call.1} parent=51 // pred_check_branch
          %333 = sbr.rel (%p331) target = $region56
        $region55: #{tpu_custom_call.1} parent=51 // pred_region
          %334 = dma.done [#allocation3], 256
        $region56: #{tpu_custom_call.1} parent=51 // pred_fallthru
          _
        // Predicated region
        $region57: #{tpu_custom_call.1} parent=51 // pred_check
          %p335 = pneg %p192
        $region58: #{tpu_custom_call.1} parent=51 // pred_check_branch
          %337 = sbr.rel (%p335) target = $region60
        $region59: #{tpu_custom_call.1} parent=51 // pred_region
          %338 = dma.done [#allocation6], 512
        $region60: #{tpu_custom_call.1} parent=51 // pred_fallthru
          _
        %s339 = smul.u32 2, %s29
        %p340 = scmp.lt.s32.totalorder %s28, 1
        %s341 = scalar_select %p340, %s28, 1
        %p342 = scmp.lt.s32.totalorder %s339, 1
        %s343 = scalar_select %p342, %s339, 1
        %s344 = smul.addr %s341, 8
        %s345 = sadd.s32 %s343, %s344
        %s346 = smul.addr %s345, 4
        %s347 = scalar_lea.vmem %s0, %s346
        %p348 = pneg %p59
        %p349 = pneg %p56
        %s350 = smul.u32 2, %s29
        %p351 = scmp.lt.s32.totalorder %s28, 1
        %s352 = scalar_select %p351, %s28, 1
        %p353 = scmp.lt.s32.totalorder %s350, 1
        %s354 = scalar_select %p353, %s350, 1
        %s355 = smul.addr %s352, 8
        %s356 = sadd.s32 %s354, %s355
        %s357 = smul.addr %s356, 4
        %s358 = scalar_lea.vmem %s1, %s357
        %p359 = pneg %p87
        %p360 = pneg %p84
        %p361 = pneg %p108
        %p362 = pneg %p105
        %p363 = pneg %p129
        %p364 = pneg %p126
        %p365 = pneg %p150
        %p366 = pneg %p147
        %p367 = pneg %p171
        %p368 = pneg %p168
        %p369 = pneg %p192
        %p370 = pneg %p189
        %p371 = pneg %p213
        %p372 = pneg %p210
        %p373 = pneg %p241
        %p374 = pneg %p238
        %s375 = sand.u32 %s228, 1
        %s376 = scalar_lea.sflag [#allocation4], %s375
        %s377 = sand.u32 %s228, 1
        %s378 = smul.addr %s377, 64
        %s379 = scalar_lea.vmem [#allocation7], %s378
        %s380 = smul.u32 2, %s29
        %p381 = scmp.lt.s32.totalorder %s28, 1
        %s382 = scalar_select %p381, %s28, 1
        %p383 = scmp.lt.s32.totalorder %s380, 1
        %s384 = scalar_select %p383, %s380, 1
        %s385 = smul.addr %s382, 8
        %s386 = sadd.s32 %s384, %s385
        %s387 = smul.addr %s386, 4
        %s388 = scalar_lea.vmem %s0, %s387
        %s389 = smul.u32 2, %s29
        %s390 = smul.u32 2, %s29
        %p391 = scmp.lt.s32.totalorder %s28, 1
        %s392 = scalar_select %p391, %s28, 1
        %p393 = scmp.lt.s32.totalorder %s390, 1
        %s394 = scalar_select %p393, %s390, 1
        %s395 = smul.addr %s392, 8
        %s396 = sadd.s32 %s394, %s395
        %s397 = smul.addr %s396, 4
        %s398 = scalar_lea.vmem %s1, %s397
        %s399 = smul.u32 2, %s29
        %s400 = smul.u32 2, %s29
        %v402 = vld [vmem:[%s388] sm:$0xff]
        %v403 = vld [vmem:[%s388 + $0x8] sm:$0xff]
        %v404 = vld [vmem:[%s388 + $0x10] sm:$0xff]
        %v405 = vld [vmem:[%s388 + $0x18] sm:$0xff]
        %v406 = vld [vmem:[#allocation2] sm:$0xf]
        %v407 = vld [vmem:[#allocation2 + $0x4] sm:$0xf]
        %v408 = vld [vmem:[#allocation2 + $0x8] sm:$0xf]
        %v409 = vld [vmem:[#allocation2 + $0xc] sm:$0xf]
        %v410 = vld [vmem:[%s3] sm:$0xff]
        %v411 = vld [vmem:[%s3 + $0x8] sm:$0xff]
        %v412 = vld [vmem:[%s3 + $0x10] sm:$0xff]
        %v413 = vld [vmem:[%s3 + $0x18] sm:$0xff]
        %415 = vset.pattern.permute.xlu0 0
        %416 = vperm.xlu0 %415, %v410
        %v417 = vpop.permute.xlu0 %416
        %420 = vset.pattern.permute.xlu0 0
        %421 = vperm.xlu0 %420, %v411
        %v422 = vpop.permute.xlu0 %421
        %425 = vset.pattern.permute.xlu0 0
        %426 = vperm.xlu0 %425, %v412
        %v427 = vpop.permute.xlu0 %426
        %430 = vset.pattern.permute.xlu0 0
        %431 = vperm.xlu0 %430, %v413
        %v432 = vpop.permute.xlu0 %431
        %v438 = vunpack.c.l.b16 %v406
        %v439 = vunpack.c.l.b16 %v407
        %v440 = vunpack.c.l.b16 %v408
        %v441 = vunpack.c.l.b16 %v409
        %v442 = vpack.c.b16 %v439, %v438
        %v443 = vpack.c.b16 %v441, %v440
        %v448 = vunpack.c.l.b16 %v402
        %v449 = vunpack.c.h.b16 %v402
        %v450 = vunpack.c.l.b16 %v403
        %v451 = vunpack.c.h.b16 %v403
        %v452 = vunpack.c.l.b16 %v404
        %v453 = vunpack.c.h.b16 %v404
        %v454 = vunpack.c.l.b16 %v405
        %v455 = vunpack.c.h.b16 %v405
        %v456 = vpack.c.b16 %v450, %v448
        %v457 = vpack.c.b16 %v451, %v449
        %v458 = vpack.c.b16 %v454, %v452
        %v459 = vpack.c.b16 %v455, %v453
        %vm464 = vcmask 261120
        %v466 = vsel %vm464, %v442, 0
        %v469 = vsel %vm464, %v443, 0
        %471 = vmatprep.subr.bf16.mxu0 %v457
        %472 = vmatpush1.bf16.msra.mxu0 %v456
        %473 = vmatprep.subr.bf16.mxu0 %v459
        %474 = vmatpush1.bf16.msra.mxu0 %v458
        %475 = vmatprep.subr.bf16.mxu0 0
        %476 = vmatpush1.bf16.msra.mxu0 0
        %477 = vmatprep.subr.bf16.mxu0 0
        %478 = vmatpush1.bf16.msra.mxu0 0
        %479 = vmatprep.subr.bf16.mxu0 0
        %480 = vmatpush1.bf16.msra.mxu0 0
        %481 = vmatprep.subr.bf16.mxu0 0
        %482 = vmatpush1.bf16.msra.mxu0 0
        %483 = vmatprep.subr.bf16.mxu0 0
        %484 = vmatpush1.bf16.msra.mxu0 0
        %485 = vmatprep.subr.bf16.mxu0 0
        %486 = vmatpush1.bf16.msra.mxu0 0
        %487 = vmatprep.subr.bf16.mxu0 0
        %488 = vmatpush1.bf16.msra.mxu0 0
        %489 = vmatprep.subr.bf16.mxu0 0
        %490 = vmatpush1.bf16.msra.mxu0 0
        %491 = vmatprep.subr.bf16.mxu0 0
        %492 = vmatpush1.bf16.msra.mxu0 0
        %493 = vmatprep.subr.bf16.mxu0 0
        %494 = vmatpush1.bf16.msra.mxu0 0
        %495 = vmatprep.subr.bf16.mxu0 0
        %496 = vmatpush1.bf16.msra.mxu0 0
        %497 = vmatprep.subr.bf16.mxu0 0
        %498 = vmatpush1.bf16.msra.mxu0 0
        %499 = vmatprep.subr.bf16.mxu0 0
        %500 = vmatpush1.bf16.msra.mxu0 0
        %501 = vmatprep.subr.bf16.mxu0 0
        %502 = vmatpush1.bf16.msra.mxu0 0
        %503 = vmatprep.mubr.bf16.mxu0 0
        %504 = vmatmul.mubr.bf16.gmra.mrb[0].mxu0 %v466
        %v505 = vpop.f32.mrb[0].mxu0
        %v506 = vadd.f32 %v417, %v505
        %v507 = vpop.f32.mrb[0].mxu0
        %v508 = vadd.f32 %v417, %v507
        %v509 = vpop.f32.mrb[0].mxu0
        %v510 = vadd.f32 %v422, %v509
        %v511 = vpop.f32.mrb[0].mxu0
        %v512 = vadd.f32 %v422, %v511
        %513 = vmatprep.mubr.bf16.mxu0 0
        %514 = vmatmul.mubr.bf16.gmra.mrb[0].mxu0 %v469
        %v515 = vpop.f32.mrb[0].mxu0
        %v516 = vadd.f32 %v427, %v515
        %v517 = vpop.f32.mrb[0].mxu0
        %v518 = vadd.f32 %v427, %v517
        %v519 = vpop.f32.mrb[0].mxu0
        %v520 = vadd.f32 %v432, %v519
        %v521 = vpop.f32.mrb[0].mxu0
        %v522 = vadd.f32 %v432, %v521
        %523 = vdwg.mxu0
        %v524 = vmax.f32 %v506, 0.0
        %v525 = vmax.f32 %v508, 0.0
        %v526 = vmax.f32 %v510, 0.0
        %v527 = vmax.f32 %v512, 0.0
        %v528 = vmax.f32 %v516, 0.0
        %v529 = vmax.f32 %v518, 0.0
        %v530 = vmax.f32 %v520, 0.0
        %v531 = vmax.f32 %v522, 0.0
        %v532 = vpack.c.bf16 %v526, %v524
        %v533 = vpack.c.bf16 %v527, %v525
        %v534 = vpack.c.bf16 %v530, %v528
        %v535 = vpack.c.bf16 %v531, %v529
        %v536 = vld [vmem:[#allocation5] sm:$0xf]
        %v537 = vld [vmem:[#allocation5 + $0x4] sm:$0xf]
        %v538 = vld [vmem:[#allocation5 + $0x8] sm:$0xf]
        %v539 = vld [vmem:[#allocation5 + $0xc] sm:$0xf]
        %v540 = vld [vmem:[#allocation5 + $0x10] sm:$0xf]
        %v541 = vld [vmem:[#allocation5 + $0x14] sm:$0xf]
        %v542 = vld [vmem:[#allocation5 + $0x18] sm:$0xf]
        %v543 = vld [vmem:[#allocation5 + $0x1c] sm:$0xf]
        %v544 = vld [vmem:[%s398] sm:$0xff]
        %v545 = vld [vmem:[%s398 + $0x8] sm:$0xff]
        %v546 = vld [vmem:[%s398 + $0x10] sm:$0xff]
        %v547 = vld [vmem:[%s398 + $0x18] sm:$0xff]
        %v548 = vld [vmem:[%s4] sm:$0xf]
        %v549 = vld [vmem:[%s4 + $0x4] sm:$0xf]
        %v550 = vld [vmem:[%s4 + $0x8] sm:$0xf]
        %v551 = vld [vmem:[%s4 + $0xc] sm:$0xf]
        %v552 = vld [vmem:[%s5] sm:$0xff]
        %v553 = vld [vmem:[%s5 + $0x8] sm:$0xff]
        %v554 = vld [vmem:[%s5 + $0x10] sm:$0xff]
        %v555 = vld [vmem:[%s5 + $0x18] sm:$0xff]
        %557 = vset.pattern.permute.xlu0 0
        %558 = vperm.xlu0 %557, %v552
        %v559 = vpop.permute.xlu0 %558
        %562 = vset.pattern.permute.xlu0 0
        %563 = vperm.xlu0 %562, %v553
        %v564 = vpop.permute.xlu0 %563
        %567 = vset.pattern.permute.xlu0 0
        %568 = vperm.xlu0 %567, %v554
        %v569 = vpop.permute.xlu0 %568
        %572 = vset.pattern.permute.xlu0 0
        %573 = vperm.xlu0 %572, %v555
        %v574 = vpop.permute.xlu0 %573
        %v580 = vunpack.c.l.b16 %v548
        %v581 = vunpack.c.l.b16 %v549
        %v582 = vunpack.c.l.b16 %v550
        %v583 = vunpack.c.l.b16 %v551
        %v584 = vpack.c.b16 %v581, %v580
        %v585 = vpack.c.b16 %v583, %v582
        %v590 = vunpack.c.l.b16 %v544
        %v591 = vunpack.c.h.b16 %v544
        %v592 = vunpack.c.l.b16 %v545
        %v593 = vunpack.c.h.b16 %v545
        %v594 = vunpack.c.l.b16 %v546
        %v595 = vunpack.c.h.b16 %v546
        %v596 = vunpack.c.l.b16 %v547
        %v597 = vunpack.c.h.b16 %v547
        %v598 = vpack.c.b16 %v592, %v590
        %v599 = vpack.c.b16 %v593, %v591
        %v600 = vpack.c.b16 %v596, %v594
        %v601 = vpack.c.b16 %v597, %v595
        %v607 = vsel %vm464, %v584, 0
        %v610 = vsel %vm464, %v585, 0
        %612 = vmatprep.subr.bf16.mxu0 %v599
        %613 = vmatpush1.bf16.msra.mxu0 %v598
        %614 = vmatprep.subr.bf16.mxu0 %v601
        %615 = vmatpush1.bf16.msra.mxu0 %v600
        %616 = vmatprep.subr.bf16.mxu0 0
        %617 = vmatpush1.bf16.msra.mxu0 0
        %618 = vmatprep.subr.bf16.mxu0 0
        %619 = vmatpush1.bf16.msra.mxu0 0
        %620 = vmatprep.subr.bf16.mxu0 0
        %621 = vmatpush1.bf16.msra.mxu0 0
        %622 = vmatprep.subr.bf16.mxu0 0
        %623 = vmatpush1.bf16.msra.mxu0 0
        %624 = vmatprep.subr.bf16.mxu0 0
        %625 = vmatpush1.bf16.msra.mxu0 0
        %626 = vmatprep.subr.bf16.mxu0 0
        %627 = vmatpush1.bf16.msra.mxu0 0
        %628 = vmatprep.subr.bf16.mxu0 0
        %629 = vmatpush1.bf16.msra.mxu0 0
        %630 = vmatprep.subr.bf16.mxu0 0
        %631 = vmatpush1.bf16.msra.mxu0 0
        %632 = vmatprep.subr.bf16.mxu0 0
        %633 = vmatpush1.bf16.msra.mxu0 0
        %634 = vmatprep.subr.bf16.mxu0 0
        %635 = vmatpush1.bf16.msra.mxu0 0
        %636 = vmatprep.subr.bf16.mxu0 0
        %637 = vmatpush1.bf16.msra.mxu0 0
        %638 = vmatprep.subr.bf16.mxu0 0
        %639 = vmatpush1.bf16.msra.mxu0 0
        %640 = vmatprep.subr.bf16.mxu0 0
        %641 = vmatpush1.bf16.msra.mxu0 0
        %642 = vmatprep.subr.bf16.mxu0 0
        %643 = vmatpush1.bf16.msra.mxu0 0
        %644 = vmatprep.mubr.bf16.mxu0 0
        %645 = vmatmul.mubr.bf16.gmra.mrb[0].mxu0 %v607
        %v646 = vpop.f32.mrb[0].mxu0
        %v647 = vadd.f32 %v559, %v646
        %v648 = vpop.f32.mrb[0].mxu0
        %v649 = vadd.f32 %v559, %v648
        %v650 = vpop.f32.mrb[0].mxu0
        %v651 = vadd.f32 %v564, %v650
        %v652 = vpop.f32.mrb[0].mxu0
        %v653 = vadd.f32 %v564, %v652
        %654 = vmatprep.mubr.bf16.mxu0 0
        %655 = vmatmul.mubr.bf16.gmra.mrb[0].mxu0 %v610
        %v656 = vpop.f32.mrb[0].mxu0
        %v657 = vadd.f32 %v569, %v656
        %v658 = vpop.f32.mrb[0].mxu0
        %v659 = vadd.f32 %v569, %v658
        %v660 = vpop.f32.mrb[0].mxu0
        %v661 = vadd.f32 %v574, %v660
        %v662 = vpop.f32.mrb[0].mxu0
        %v663 = vadd.f32 %v574, %v662
        %664 = vdwg.mxu0
        %v665 = vmax.f32 %v647, 0.0
        %v666 = vmax.f32 %v649, 0.0
        %v667 = vmax.f32 %v651, 0.0
        %v668 = vmax.f32 %v653, 0.0
        %v669 = vmax.f32 %v657, 0.0
        %v670 = vmax.f32 %v659, 0.0
        %v671 = vmax.f32 %v661, 0.0
        %v672 = vmax.f32 %v663, 0.0
        %v673 = vpack.c.bf16 %v667, %v665
        %v674 = vpack.c.bf16 %v668, %v666
        %v675 = vpack.c.bf16 %v671, %v669
        %v676 = vpack.c.bf16 %v672, %v670
        %v685 = vunpack.c.l.b16 %v536
        %v686 = vunpack.c.l.b16 %v537
        %v687 = vunpack.c.l.b16 %v538
        %v688 = vunpack.c.l.b16 %v539
        %v689 = vunpack.c.l.b16 %v540
        %v690 = vunpack.c.l.b16 %v541
        %v691 = vunpack.c.l.b16 %v542
        %v692 = vunpack.c.l.b16 %v543
        %v693 = vpack.c.b16 %v686, %v685
        %v694 = vpack.c.b16 %v688, %v687
        %v695 = vpack.c.b16 %v690, %v689
        %v696 = vpack.c.b16 %v692, %v691
        %697 = vrot.lane.b32.xlu0 %v693, 96
        %v698 = vpop.permute.xlu0 %697
        %699 = vrot.lane.b32.xlu0 %v694, 96
        %v700 = vpop.permute.xlu0 %699
        %701 = vrot.lane.b32.xlu0 %v695, 96
        %v702 = vpop.permute.xlu0 %701
        %703 = vrot.lane.b32.xlu0 %v696, 96
        %v704 = vpop.permute.xlu0 %703
        %v706 = vsel %vm464, %v698, 0
        %v709 = vsel %vm464, %v700, 0
        %v712 = vsel %vm464, %v702, 0
        %v715 = vsel %vm464, %v704, 0
        %717 = vmatprep.subr.bf16.mxu0 %v674
        %718 = vmatpush1.bf16.msra.mxu0 %v673
        %719 = vmatprep.subr.bf16.mxu0 %v676
        %720 = vmatpush1.bf16.msra.mxu0 %v675
        %721 = vmatprep.subr.bf16.mxu0 0
        %722 = vmatpush1.bf16.msra.mxu0 0
        %723 = vmatprep.subr.bf16.mxu0 0
        %724 = vmatpush1.bf16.msra.mxu0 0
        %725 = vmatprep.subr.bf16.mxu0 0
        %726 = vmatpush1.bf16.msra.mxu0 0
        %727 = vmatprep.subr.bf16.mxu0 0
        %728 = vmatpush1.bf16.msra.mxu0 0
        %729 = vmatprep.subr.bf16.mxu0 0
        %730 = vmatpush1.bf16.msra.mxu0 0
        %731 = vmatprep.subr.bf16.mxu0 0
        %732 = vmatpush1.bf16.msra.mxu0 0
        %733 = vmatprep.subr.bf16.mxu0 0
        %734 = vmatpush1.bf16.msra.mxu0 0
        %735 = vmatprep.subr.bf16.mxu0 0
        %736 = vmatpush1.bf16.msra.mxu0 0
        %737 = vmatprep.subr.bf16.mxu0 0
        %738 = vmatpush1.bf16.msra.mxu0 0
        %739 = vmatprep.subr.bf16.mxu0 0
        %740 = vmatpush1.bf16.msra.mxu0 0
        %741 = vmatprep.subr.bf16.mxu0 0
        %742 = vmatpush1.bf16.msra.mxu0 0
        %743 = vmatprep.subr.bf16.mxu0 0
        %744 = vmatpush1.bf16.msra.mxu0 0
        %745 = vmatprep.subr.bf16.mxu0 0
        %746 = vmatpush1.bf16.msra.mxu0 0
        %747 = vmatprep.subr.bf16.mxu0 0
        %748 = vmatpush1.bf16.msra.mxu0 0
        %749 = vmatprep.mubr.bf16.mxu0 0
        %750 = vmatmul.mubr.bf16.gmra.mrb[0].mxu0 %v706
        %v751 = vpop.f32.mrb[0].mxu0
        %v752 = vadd.f32 0.0, %v751
        %v753 = vpop.f32.mrb[0].mxu0
        %v754 = vadd.f32 0.0, %v753
        %v755 = vpop.f32.mrb[0].mxu0
        %v756 = vadd.f32 0.0, %v755
        %v757 = vpop.f32.mrb[0].mxu0
        %v758 = vadd.f32 0.0, %v757
        %759 = vmatprep.mubr.bf16.mxu0 0
        %760 = vmatmul.mubr.bf16.gmra.mrb[0].mxu0 %v709
        %v761 = vpop.f32.mrb[0].mxu0
        %v762 = vadd.f32 0.0, %v761
        %v763 = vpop.f32.mrb[0].mxu0
        %v764 = vadd.f32 0.0, %v763
        %v765 = vpop.f32.mrb[0].mxu0
        %v766 = vadd.f32 0.0, %v765
        %v767 = vpop.f32.mrb[0].mxu0
        %v768 = vadd.f32 0.0, %v767
        %769 = vmatprep.mubr.bf16.mxu0 0
        %770 = vmatmul.mubr.bf16.gmra.mrb[0].mxu0 %v712
        %v771 = vpop.f32.mrb[0].mxu0
        %v772 = vadd.f32 0.0, %v771
        %v773 = vpop.f32.mrb[0].mxu0
        %v774 = vadd.f32 0.0, %v773
        %v775 = vpop.f32.mrb[0].mxu0
        %v776 = vadd.f32 0.0, %v775
        %v777 = vpop.f32.mrb[0].mxu0
        %v778 = vadd.f32 0.0, %v777
        %779 = vmatprep.mubr.bf16.mxu0 0
        %780 = vmatmul.mubr.bf16.gmra.mrb[0].mxu0 %v715
        %v781 = vpop.f32.mrb[0].mxu0
        %v782 = vadd.f32 0.0, %v781
        %v783 = vpop.f32.mrb[0].mxu0
        %v784 = vadd.f32 0.0, %v783
        %v785 = vpop.f32.mrb[0].mxu0
        %v786 = vadd.f32 0.0, %v785
        %v787 = vpop.f32.mrb[0].mxu0
        %v788 = vadd.f32 0.0, %v787
        %789 = vdwg.mxu0
        %v791 = vsel %vm464, %v693, 0
        %v794 = vsel %vm464, %v694, 0
        %v797 = vsel %vm464, %v695, 0
        %v800 = vsel %vm464, %v696, 0
        %802 = vmatprep.subr.bf16.mxu0 %v533
        %803 = vmatpush1.bf16.msra.mxu0 %v532
        %804 = vmatprep.subr.bf16.mxu0 %v535
        %805 = vmatpush1.bf16.msra.mxu0 %v534
        %806 = vmatprep.subr.bf16.mxu0 0
        %807 = vmatpush1.bf16.msra.mxu0 0
        %808 = vmatprep.subr.bf16.mxu0 0
        %809 = vmatpush1.bf16.msra.mxu0 0
        %810 = vmatprep.subr.bf16.mxu0 0
        %811 = vmatpush1.bf16.msra.mxu0 0
        %812 = vmatprep.subr.bf16.mxu0 0
        %813 = vmatpush1.bf16.msra.mxu0 0
        %814 = vmatprep.subr.bf16.mxu0 0
        %815 = vmatpush1.bf16.msra.mxu0 0
        %816 = vmatprep.subr.bf16.mxu0 0
        %817 = vmatpush1.bf16.msra.mxu0 0
        %818 = vmatprep.subr.bf16.mxu0 0
        %819 = vmatpush1.bf16.msra.mxu0 0
        %820 = vmatprep.subr.bf16.mxu0 0
        %821 = vmatpush1.bf16.msra.mxu0 0
        %822 = vmatprep.subr.bf16.mxu0 0
        %823 = vmatpush1.bf16.msra.mxu0 0
        %824 = vmatprep.subr.bf16.mxu0 0
        %825 = vmatpush1.bf16.msra.mxu0 0
        %826 = vmatprep.subr.bf16.mxu0 0
        %827 = vmatpush1.bf16.msra.mxu0 0
        %828 = vmatprep.subr.bf16.mxu0 0
        %829 = vmatpush1.bf16.msra.mxu0 0
        %830 = vmatprep.subr.bf16.mxu0 0
        %831 = vmatpush1.bf16.msra.mxu0 0
        %832 = vmatprep.subr.bf16.mxu0 0
        %833 = vmatpush1.bf16.msra.mxu0 0
        %834 = vmatprep.mubr.bf16.mxu0 0
        %835 = vmatmul.mubr.bf16.gmra.mrb[0].mxu0 %v791
        %v836 = vpop.f32.mrb[0].mxu0
        %v837 = vadd.f32 %v752, %v836
        %v838 = vpop.f32.mrb[0].mxu0
        %v839 = vadd.f32 %v754, %v838
        %v840 = vpop.f32.mrb[0].mxu0
        %v841 = vadd.f32 %v756, %v840
        %v842 = vpop.f32.mrb[0].mxu0
        %v843 = vadd.f32 %v758, %v842
        %844 = vmatprep.mubr.bf16.mxu0 0
        %845 = vmatmul.mubr.bf16.gmra.mrb[0].mxu0 %v794
        %v846 = vpop.f32.mrb[0].mxu0
        %v847 = vadd.f32 %v762, %v846
        %v848 = vpop.f32.mrb[0].mxu0
        %v849 = vadd.f32 %v764, %v848
        %v850 = vpop.f32.mrb[0].mxu0
        %v851 = vadd.f32 %v766, %v850
        %v852 = vpop.f32.mrb[0].mxu0
        %v853 = vadd.f32 %v768, %v852
        %854 = vmatprep.mubr.bf16.mxu0 0
        %855 = vmatmul.mubr.bf16.gmra.mrb[0].mxu0 %v797
        %v856 = vpop.f32.mrb[0].mxu0
        %v857 = vadd.f32 %v772, %v856
        %v858 = vpop.f32.mrb[0].mxu0
        %v859 = vadd.f32 %v774, %v858
        %v860 = vpop.f32.mrb[0].mxu0
        %v861 = vadd.f32 %v776, %v860
        %v862 = vpop.f32.mrb[0].mxu0
        %v863 = vadd.f32 %v778, %v862
        %864 = vmatprep.mubr.bf16.mxu0 0
        %865 = vmatmul.mubr.bf16.gmra.mrb[0].mxu0 %v800
        %v866 = vpop.f32.mrb[0].mxu0
        %v867 = vadd.f32 %v782, %v866
        %v868 = vpop.f32.mrb[0].mxu0
        %v869 = vadd.f32 %v784, %v868
        %v870 = vpop.f32.mrb[0].mxu0
        %v871 = vadd.f32 %v786, %v870
        %v872 = vpop.f32.mrb[0].mxu0
        %v873 = vadd.f32 %v788, %v872
        %874 = vdwg.mxu0
        %v875 = vld [vmem:[%s7] sm:$0xff]
        %v876 = vld [vmem:[%s7 + $0x8] sm:$0xff]
        %v877 = vld [vmem:[%s7 + $0x10] sm:$0xff]
        %v878 = vld [vmem:[%s7 + $0x18] sm:$0xff]
        %v879 = vld [vmem:[%s7 + $0x20] sm:$0xff]
        %v880 = vld [vmem:[%s7 + $0x28] sm:$0xff]
        %v881 = vld [vmem:[%s7 + $0x30] sm:$0xff]
        %v882 = vld [vmem:[%s7 + $0x38] sm:$0xff]
        %884 = vset.pattern.permute.xlu0 0
        %885 = vperm.xlu0 %884, %v875
        %v886 = vpop.permute.xlu0 %885
        %889 = vset.pattern.permute.xlu0 0
        %890 = vperm.xlu0 %889, %v876
        %v891 = vpop.permute.xlu0 %890
        %894 = vset.pattern.permute.xlu0 0
        %895 = vperm.xlu0 %894, %v877
        %v896 = vpop.permute.xlu0 %895
        %899 = vset.pattern.permute.xlu0 0
        %900 = vperm.xlu0 %899, %v878
        %v901 = vpop.permute.xlu0 %900
        %904 = vset.pattern.permute.xlu0 0
        %905 = vperm.xlu0 %904, %v879
        %v906 = vpop.permute.xlu0 %905
        %909 = vset.pattern.permute.xlu0 0
        %910 = vperm.xlu0 %909, %v880
        %v911 = vpop.permute.xlu0 %910
        %914 = vset.pattern.permute.xlu0 0
        %915 = vperm.xlu0 %914, %v881
        %v916 = vpop.permute.xlu0 %915
        %919 = vset.pattern.permute.xlu0 0
        %920 = vperm.xlu0 %919, %v882
        %v921 = vpop.permute.xlu0 %920
        %v923 = vadd.f32 %v837, %v886
        %v924 = vadd.f32 %v839, %v886
        %v925 = vadd.f32 %v841, %v891
        %v926 = vadd.f32 %v843, %v891
        %v927 = vadd.f32 %v847, %v896
        %v928 = vadd.f32 %v849, %v896
        %v929 = vadd.f32 %v851, %v901
        %v930 = vadd.f32 %v853, %v901
        %v931 = vadd.f32 %v857, %v906
        %v932 = vadd.f32 %v859, %v906
        %v933 = vadd.f32 %v861, %v911
        %v934 = vadd.f32 %v863, %v911
        %v935 = vadd.f32 %v867, %v916
        %v936 = vadd.f32 %v869, %v916
        %v937 = vadd.f32 %v871, %v921
        %v938 = vadd.f32 %v873, %v921
        %v939 = vmax.f32 %v923, 0.0
        %v940 = vmax.f32 %v924, 0.0
        %v941 = vmax.f32 %v925, 0.0
        %v942 = vmax.f32 %v926, 0.0
        %v943 = vmax.f32 %v927, 0.0
        %v944 = vmax.f32 %v928, 0.0
        %v945 = vmax.f32 %v929, 0.0
        %v946 = vmax.f32 %v930, 0.0
        %v947 = vmax.f32 %v931, 0.0
        %v948 = vmax.f32 %v932, 0.0
        %v949 = vmax.f32 %v933, 0.0
        %v950 = vmax.f32 %v934, 0.0
        %v951 = vmax.f32 %v935, 0.0
        %v952 = vmax.f32 %v936, 0.0
        %v953 = vmax.f32 %v937, 0.0
        %v954 = vmax.f32 %v938, 0.0
        %v955 = vpack.c.bf16 %v941, %v939
        %v956 = vpack.c.bf16 %v942, %v940
        %v957 = vpack.c.bf16 %v945, %v943
        %v958 = vpack.c.bf16 %v946, %v944
        %v959 = vpack.c.bf16 %v949, %v947
        %v960 = vpack.c.bf16 %v950, %v948
        %v961 = vpack.c.bf16 %v953, %v951
        %v962 = vpack.c.bf16 %v954, %v952
        %v971 = vunpack.c.l.b16 %v955
        %v972 = vunpack.c.l.b16 %v956
        %v973 = vunpack.c.h.b16 %v955
        %v974 = vunpack.c.h.b16 %v956
        %v975 = vunpack.c.l.b16 %v957
        %v976 = vunpack.c.l.b16 %v958
        %v977 = vunpack.c.h.b16 %v957
        %v978 = vunpack.c.h.b16 %v958
        %v979 = vunpack.c.l.b16 %v959
        %v980 = vunpack.c.l.b16 %v960
        %v981 = vunpack.c.h.b16 %v959
        %v982 = vunpack.c.h.b16 %v960
        %v983 = vunpack.c.l.b16 %v961
        %v984 = vunpack.c.l.b16 %v962
        %v985 = vunpack.c.h.b16 %v961
        %v986 = vunpack.c.h.b16 %v962
        %v987 = vpack.c.b16 %v972, %v971
        %v988 = vpack.c.b16 %v974, %v973
        %v989 = vpack.c.b16 %v976, %v975
        %v990 = vpack.c.b16 %v978, %v977
        %v991 = vpack.c.b16 %v980, %v979
        %v992 = vpack.c.b16 %v982, %v981
        %v993 = vpack.c.b16 %v984, %v983
        %v994 = vpack.c.b16 %v986, %v985
        %1003 = vst [vmem:[%s379] sm:$0xff] %v987
        %1004 = vst [vmem:[%s379 + $0x8] sm:$0xff] %v988
        %1005 = vst [vmem:[%s379 + $0x10] sm:$0xff] %v989
        %1006 = vst [vmem:[%s379 + $0x18] sm:$0xff] %v990
        %1007 = vst [vmem:[%s379 + $0x20] sm:$0xff] %v991
        %1008 = vst [vmem:[%s379 + $0x28] sm:$0xff] %v992
        %1009 = vst [vmem:[%s379 + $0x30] sm:$0xff] %v993
        %1010 = vst [vmem:[%s379 + $0x38] sm:$0xff] %v994
        %s1011 = sand.u32 %s228, 1
        %s1012 = scalar_lea.sflag [#allocation4], %s1011
        %s1013 = sand.u32 %s228, 1
        %s1014 = smul.addr %s1013, 64
        %s1015 = scalar_lea.vmem [#allocation7], %s1014
        // Predicated region
        $region61: #{tpu_custom_call.1} parent=51 // pred_check
          %p1016 = pneg %p238
        $region62: #{tpu_custom_call.1} parent=51 // pred_check_branch
          %1018 = sbr.rel (%p1016) target = $region64
        $region63: #{tpu_custom_call.1} parent=51 // pred_region
          %s1019 = smul.u32 2, %s29
          %s1021 = ssub.s32 1024, 1024
          %1022 = vsyncadd %s1012, %s1021
          %s1023 = smul.addr %s28, 16
          %s1024 = sadd.s32 %s1019, %s1023
          %s1025 = smul.addr %s1024, 64
          %s1026 = scalar_lea.hbm %s8, %s1025
          %s1027 = sshll.u32 %s1015, 4
          %s1028 = int_to_ptr.vmem [resolvable:$true] %s1027
          %1033 = dma.vmem_to_hbm [thread:$0]  %s1028, 1024, %s1026, %s1012, 128, 128, 8
        $region64: #{tpu_custom_call.1} parent=51 // pred_fallthru
          _
      $region52: #{tpu_custom_call.1} parent=5 // pred_fallthru
        _
      %p1034 = scmp.le.s32.totalorder 2, %s19
      // Predicated region
      $region65: #{tpu_custom_call.1} parent=5 // pred_check
        %p1035 = pneg %p1034
      $region66: #{tpu_custom_call.1} parent=5 // pred_check_branch
        %1037 = sbr.rel (%p1035) target = $region68
      $region67: #{tpu_custom_call.1} parent=5 // pred_region
        %s1038 = ssub.s32 %s19, 2
        // Predicated region
        $region69: #{tpu_custom_call.1} parent=67 // pred_check
          %p1039 = pneg %p244
        $region70: #{tpu_custom_call.1} parent=67 // pred_check_branch
          %1041 = sbr.rel (%p1039) target = $region72
        $region71: #{tpu_custom_call.1} parent=67 // pred_region
          %s1042 = sand.u32 %s229, 1
          %s1043 = scalar_lea.sflag [#allocation4], %s1042
          %s1044 = sand.u32 %s229, 1
          %s1045 = smul.addr %s1044, 64
          %s1046 = scalar_lea.vmem [#allocation7], %s1045
          %1047 = dma.done %s1043, 1024
        $region72: #{tpu_custom_call.1} parent=67 // pred_fallthru
          _
      $region68: #{tpu_custom_call.1} parent=5 // pred_fallthru
        _
    $region6: #{tpu_custom_call.1} parent=1 // loop_footer
      %s23 = sadd.s32 1, %s19
    $region7: #{tpu_custom_call.1} parent=1 // loop_footer_branch
      %18 = sbr.rel target = $region3
    $region8: #{tpu_custom_call.1} parent=1 // loop_exit
      _
    %1048 = vsyncpa [#allocation3], 1
    %s1049 = scalar_lea.sflag [#allocation3], 1
    %1050 = vsyncpa %s1049, 1
    %1051 = vsyncpa [#allocation6], 1
    %1052 = vsyncpa [#allocation4], 1
    %s1053 = scalar_lea.sflag [#allocation4], 1
    %1054 = vsyncpa %s1053, 1

</llo_original>
